<compile_context>
chip_gen: v5e
topology: v5e:2x2
jax: 0.10.0
libtpu: 0.0.40
codegen_flags: <defaults>
</compile_context>

<pallas_src>
import jax
import jax.numpy as jnp
import numpy as np
from jax.experimental import pallas as pl
from jax.experimental.pallas import tpu as pltpu

# Model config (mirrors MultiTaskConvNet with a 1-layer conv_block:
#   conv1 = Conv2d(C_IN, C_OUT, 3, stride=1, padding=1); ReLU; pool1 = MaxPool2d(2, 2);
#   fc in_features = C_OUT * (H//2) * (W//2) = 512)
N, C_IN, H, W = 2, 4, 16, 16
C_OUT = 8
KH = KW = 3
HP, WP = H // 2, W // 2
PP = HP * WP                # pooled positions per sample (64)
NHW = N * H * W             # conv positions, batch folded (512)
NPP = N * PP                # pooled positions, batch folded (128)
FLAT = C_OUT * PP           # fc input features (512)
HIDDEN = 512
PAD = 2 * W                 # lane padding on the pool scratch (>= W shift)
OUT_W = 8                   # merged head output width: [class(1), bbox(4), pad(3)]


def _selT_matrix():
    # (NHW, NPP) one-hot selector: source column n*H*W + 2*ph*W + 2*pw
    # -> pooled column n*PP + ph*WP + pw  (even-(h, w) anchors of each 2x2 window)
    selT = np.zeros((NHW, NPP), dtype=np.float32)
    for n in range(N):
        for ph in range(HP):
            for pw in range(WP):
                src = n * H * W + (2 * ph) * W + (2 * pw)
                dst = n * PP + ph * WP + pw
                selT[src, dst] = 1.0
    return jnp.asarray(selT)


SELT_MAT = _selT_matrix()


def fused_forward_kernel(colsT_ref, wT_ref, bc_ref, selT_ref,
                         w1_ref, b1_ref, w2_ref, b2_ref,
                         out_ref, buf_ref, flat_ref):
    # --- conv as a single lane-dense GEMM over the folded batch ---
    # (C_OUT, KH*KW*C_IN) @ (KH*KW*C_IN, N*H*W) -> (C_OUT, N*H*W); H*W on lanes.
    y = jnp.dot(wT_ref[...], colsT_ref[...], preferred_element_type=jnp.float32)
    y = jnp.maximum(y + bc_ref[...], 0.0)                      # bias + ReLU (f32 VPU)

    # --- 2x2 / stride-2 max pool ---
    # Neighbour shifts done as offset-window loads from a zero-padded VMEM scratch
    # (replaces the two 256x256 shift-matrix MXU matmuls; direction-unambiguous).
    # Padding / wrap lanes only reach non-selected (odd h / odd w) columns.
    buf_ref[...] = jnp.zeros_like(buf_ref)
    buf_ref[:, 0:NHW] = y
    m = jnp.maximum(buf_ref[:, 0:NHW], buf_ref[:, 1:NHW + 1])          # pair along W
    buf_ref[:, 0:NHW] = m
    m = jnp.maximum(buf_ref[:, 0:NHW], buf_ref[:, W:NHW + W])          # pair along H
    # keep only rows at even (h, w): tiny (C_OUT, NHW) @ (NHW, NPP) selection matmul
    pooledT = jnp.dot(m, selT_ref[...], preferred_element_type=jnp.float32)  # (C_OUT, NPP)

    # --- flatten to (N, FLAT) in PyTorch (C, H, W) order, kept in VMEM scratch ---
    for n in range(N):
        for c in range(C_OUT):
            flat_ref[n:n + 1, c * PP:(c + 1) * PP] = pooledT[c:c + 1, n * PP:(n + 1) * PP]

    # --- both FC heads fused ---
    # fc1(class) and fc1(bbox) as ONE bf16 GEMM (f32 accumulate); elementwise in f32.
    xb = flat_ref[...].astype(jnp.bfloat16)
    h = jnp.dot(xb, w1_ref[...], preferred_element_type=jnp.float32) + b1_ref[...]
    h = jnp.maximum(h, 0.0)
    # block-diagonal fc2 -> single lane-aligned (N, 8) output [class | bbox | 0-pad]
    out_ref[...] = jnp.dot(h, w2_ref[...], preferred_element_type=jnp.float32) + b2_ref[...]


def multitask_convnet_forward(x_nchw, params):
    # --- layout glue (no MACs): NCHW -> NHWC, zero pad (padding=1), im2col, transpose ---
    x = jnp.transpose(x_nchw, (0, 2, 3, 1)).astype(jnp.float32)          # (N, H, W, C_IN)
    xp = jnp.pad(x, ((0, 0), (1, 1), (1, 1), (0, 0)))
    patches = [xp[:, kh:kh + H, kw:kw + W, :] for kh in range(KH) for kw in range(KW)]
    cols = jnp.stack(patches, axis=3).reshape(NHW, KH * KW * C_IN)       # (512, 36)
    colsT = cols.T                                                       # (36, 512)
    wT = params["conv_w"].reshape(KH * KW * C_IN, C_OUT).T               # (8, 36)
    bc = params["conv_b"].reshape(C_OUT, 1)                              # (8, 1)

    # --- one-time head packing (param shuffling only) ---
    w1cat = jnp.concatenate([params["w1c"], params["w1b"]], axis=1).astype(jnp.bfloat16)  # (512, 1024)
    b1cat = jnp.concatenate([params["b1c"], params["b1b"]], axis=1)                        # (1, 1024)
    w2blk = jnp.zeros((2 * HIDDEN, OUT_W), jnp.float32)
    w2blk = w2blk.at[:HIDDEN, 0:1].set(params["w2c"])
    w2blk = w2blk.at[HIDDEN:, 1:5].set(params["w2b"])
    b2blk = jnp.concatenate(
        [params["b2c"], params["b2b"], jnp.zeros((1, OUT_W - 5), jnp.float32)], axis=1)    # (1, 8)

    vmem = pl.BlockSpec(memory_space=pltpu.MemorySpace.VMEM)
    out = pl.pallas_call(
        fused_forward_kernel,
        out_shape=jax.ShapeDtypeStruct((N, OUT_W), jnp.float32),
        in_specs=[vmem] * 8,
        out_specs=vmem,
        scratch_shapes=[
            pltpu.VMEM((C_OUT, NHW + PAD), jnp.float32),   # pool shift buffer
            pltpu.VMEM((N, FLAT), jnp.float32),            # flattened conv features
        ],
    )(colsT, wT, bc, SELT_MAT, w1cat, b1cat, w2blk, b2blk)

    class_out = out[:, 0:1]
    bbox_out = out[:, 1:5]
    return class_out, bbox_out


def reference_forward(x_nchw, params):
    x = jnp.transpose(x_nchw, (0, 2, 3, 1)).astype(jnp.float32)
    y = jax.lax.conv_general_dilated(
        x, params["conv_w"], window_strides=(1, 1), padding=((1, 1), (1, 1)),
        dimension_numbers=("NHWC", "HWIO", "NHWC"))
    y = jax.nn.relu(y + params["conv_b"])
    y = jax.lax.reduce_window(y, -jnp.inf, jax.lax.max,
                              (1, 2, 2, 1), (1, 2, 2, 1), "VALID")       # (N, HP, WP, C)
    flat = jnp.transpose(y, (0, 3, 1, 2)).reshape(x.shape[0], -1)        # PyTorch (C,H,W) flatten
    hc = jax.nn.relu(flat @ params["w1c"] + params["b1c"])
    class_out = hc @ params["w2c"] + params["b2c"]
    hb = jax.nn.relu(flat @ params["w1b"] + params["b1b"])
    bbox_out = hb @ params["w2b"] + params["b2b"]
    return class_out, bbox_out


if __name__ == "__main__":
    key = jax.random.PRNGKey(0)
    kx, *kp = jax.random.split(key, 11)

    def init(k, shape, scale):
        return (scale * jax.random.normal(k, shape, dtype=jnp.float32)).astype(jnp.float32)

    params = {
        "conv_w": init(kp[0], (KH, KW, C_IN, C_OUT), 1.0 / np.sqrt(KH * KW * C_IN)),
        "conv_b": init(kp[1], (1, C_OUT), 0.1),
        "w1c": init(kp[2], (FLAT, HIDDEN), 1.0 / np.sqrt(FLAT)),
        "b1c": init(kp[3], (1, HIDDEN), 0.1),
        "w2c": init(kp[4], (HIDDEN, 1), 1.0 / np.sqrt(HIDDEN)),
        "b2c": init(kp[5], (1, 1), 0.1),
        "w1b": init(kp[6], (FLAT, HIDDEN), 1.0 / np.sqrt(FLAT)),
        "b1b": init(kp[7], (1, HIDDEN), 0.1),
        "w2b": init(kp[8], (HIDDEN, 4), 1.0 / np.sqrt(HIDDEN)),
        "b2b": init(kp[9], (1, 4), 0.1),
    }
    x = jax.random.normal(kx, (N, C_IN, H, W), dtype=jnp.float32)

    fwd = jax.jit(multitask_convnet_forward)
    class_out, bbox_out = fwd(x, params)
    jax.block_until_ready((class_out, bbox_out))

    ref_class, ref_bbox = reference_forward(x, params)
    assert class_out.shape == (N, 1) and bbox_out.shape == (N, 4)
    assert jnp.allclose(class_out, ref_class, rtol=5e-2, atol=5e-2)
    assert jnp.allclose(bbox_out, ref_bbox, rtol=5e-2, atol=5e-2)
    print("KERNEL_OK")
</pallas_src>

<mosaic_0001>
module attributes {stable_mosaic.version = 11 : i64} {
  func.func @fused_forward_kernel(%arg0: memref<36x512xf32, #tpu.memory_space<vmem>>, %arg1: memref<8x36xf32, #tpu.memory_space<vmem>>, %arg2: memref<8x1xf32, #tpu.memory_space<vmem>>, %arg3: memref<512x128xf32, #tpu.memory_space<vmem>>, %arg4: memref<512x1024xbf16, #tpu.memory_space<vmem>>, %arg5: memref<1x1024xf32, #tpu.memory_space<vmem>>, %arg6: memref<1024x8xf32, #tpu.memory_space<vmem>>, %arg7: memref<1x8xf32, #tpu.memory_space<vmem>>, %arg8: memref<2x8xf32, #tpu.memory_space<vmem>>, %arg9: memref<8x544xf32, #tpu.memory_space<vmem>>, %arg10: memref<2x512xf32, #tpu.memory_space<vmem>>) attributes {dimension_semantics = [], scalar_prefetch = 0 : i64, scratch_operands = 2 : i64, tpu.core_type = #tpu.core_type<tc>} {
    %c0 = arith.constant 0 : index
    %c0_0 = arith.constant 0 : index
    %0 = vector.load %arg1[%c0, %c0_0] : memref<8x36xf32, #tpu.memory_space<vmem>>, vector<8x36xf32>
    %c0_1 = arith.constant 0 : index
    %c0_2 = arith.constant 0 : index
    %1 = vector.load %arg0[%c0_1, %c0_2] : memref<36x512xf32, #tpu.memory_space<vmem>>, vector<36x512xf32>
    %cst = arith.constant dense<0.000000e+00> : vector<8x512xf32>
    %2 = tpu.matmul %0, %1, %cst {dimension_numbers = #tpu.dot_dimension_numbers<[1], [0], [0], [1], [0, 0, 1, 1], [], []>} : vector<8x36xf32>, vector<36x512xf32>, vector<8x512xf32> -> vector<8x512xf32>
    %c0_3 = arith.constant 0 : index
    %c0_4 = arith.constant 0 : index
    %3 = vector.load %arg2[%c0_3, %c0_4] : memref<8x1xf32, #tpu.memory_space<vmem>>, vector<8x1xf32>
    %4 = vector.broadcast %3 : vector<8x1xf32> to vector<8x512xf32>
    %5 = arith.addf %2, %4 : vector<8x512xf32>
    %cst_5 = arith.constant 0.000000e+00 : f32
    %6 = vector.broadcast %cst_5 : f32 to vector<8x512xf32>
    %7 = arith.maximumf %5, %6 : vector<8x512xf32>
    %cst_6 = arith.constant 0.000000e+00 : f32
    %8 = vector.broadcast %cst_6 : f32 to vector<8x544xf32>
    %c0_7 = arith.constant 0 : index
    %c0_8 = arith.constant 0 : index
    %9 = vector.load %arg9[%c0_7, %c0_8] : memref<8x544xf32, #tpu.memory_space<vmem>>, vector<8x544xf32>
    tpu.vector_store %arg9[%c0_7, %c0_8], %8 {strides = array<i32>} : memref<8x544xf32, #tpu.memory_space<vmem>>, vector<8x544xf32>,
    %c0_9 = arith.constant 0 : index
    %c0_10 = arith.constant 0 : index
    %10 = vector.load %arg9[%c0_9, %c0_10] : memref<8x544xf32, #tpu.memory_space<vmem>>, vector<8x512xf32>
    tpu.vector_store %arg9[%c0_9, %c0_10], %7 {strides = array<i32>} : memref<8x544xf32, #tpu.memory_space<vmem>>, vector<8x512xf32>,
    %c0_11 = arith.constant 0 : index
    %c0_12 = arith.constant 0 : index
    %11 = vector.load %arg9[%c0_11, %c0_12] : memref<8x544xf32, #tpu.memory_space<vmem>>, vector<8x512xf32>
    %c0_13 = arith.constant 0 : index
    %c1 = arith.constant 1 : index
    %12 = vector.load %arg9[%c0_13, %c1] : memref<8x544xf32, #tpu.memory_space<vmem>>, vector<8x512xf32>
    %13 = arith.maximumf %11, %12 : vector<8x512xf32>
    %c0_14 = arith.constant 0 : index
    %c0_15 = arith.constant 0 : index
    %14 = vector.load %arg9[%c0_14, %c0_15] : memref<8x544xf32, #tpu.memory_space<vmem>>, vector<8x512xf32>
    tpu.vector_store %arg9[%c0_14, %c0_15], %13 {strides = array<i32>} : memref<8x544xf32, #tpu.memory_space<vmem>>, vector<8x512xf32>,
    %c0_16 = arith.constant 0 : index
    %c0_17 = arith.constant 0 : index
    %15 = vector.load %arg9[%c0_16, %c0_17] : memref<8x544xf32, #tpu.memory_space<vmem>>, vector<8x512xf32>
    %c0_18 = arith.constant 0 : index
    %c16 = arith.constant 16 : index
    %16 = vector.load %arg9[%c0_18, %c16] : memref<8x544xf32, #tpu.memory_space<vmem>>, vector<8x512xf32>
    %17 = arith.maximumf %15, %16 : vector<8x512xf32>
    %c0_19 = arith.constant 0 : index
    %c0_20 = arith.constant 0 : index
    %18 = vector.load %arg3[%c0_19, %c0_20] : memref<512x128xf32, #tpu.memory_space<vmem>>, vector<512x128xf32>
    %cst_21 = arith.constant dense<0.000000e+00> : vector<8x128xf32>
    %19 = tpu.matmul %17, %18, %cst_21 {dimension_numbers = #tpu.dot_dimension_numbers<[1], [0], [0], [1], [0, 0, 1, 1], [], []>} : vector<8x512xf32>, vector<512x128xf32>, vector<8x128xf32> -> vector<8x128xf32>
    %20 = vector.extract_strided_slice %19 {offsets = [0, 0], sizes = [1, 64], strides = [1, 1]} : vector<8x128xf32> to vector<1x64xf32>
    %c0_22 = arith.constant 0 : index
    %c0_23 = arith.constant 0 : index
    %21 = vector.load %arg10[%c0_22, %c0_23] : memref<2x512xf32, #tpu.memory_space<vmem>>, vector<1x64xf32>
    tpu.vector_store %arg10[%c0_22, %c0_23], %20 {strides = array<i32>} : memref<2x512xf32, #tpu.memory_space<vmem>>, vector<1x64xf32>,
    %22 = vector.extract_strided_slice %19 {offsets = [1, 0], sizes = [1, 64], strides = [1, 1]} : vector<8x128xf32> to vector<1x64xf32>
    %c0_24 = arith.constant 0 : index
    %c64 = arith.constant 64 : index
    %23 = vector.load %arg10[%c0_24, %c64] : memref<2x512xf32, #tpu.memory_space<vmem>>, vector<1x64xf32>
    tpu.vector_store %arg10[%c0_24, %c64], %22 {strides = array<i32>} : memref<2x512xf32, #tpu.memory_space<vmem>>, vector<1x64xf32>,
    %24 = vector.extract_strided_slice %19 {offsets = [2, 0], sizes = [1, 64], strides = [1, 1]} : vector<8x128xf32> to vector<1x64xf32>
    %c0_25 = arith.constant 0 : index
    %c128 = arith.constant 128 : index
    %25 = vector.load %arg10[%c0_25, %c128] : memref<2x512xf32, #tpu.memory_space<vmem>>, vector<1x64xf32>
    tpu.vector_store %arg10[%c0_25, %c128], %24 {strides = array<i32>} : memref<2x512xf32, #tpu.memory_space<vmem>>, vector<1x64xf32>,
    %26 = vector.extract_strided_slice %19 {offsets = [3, 0], sizes = [1, 64], strides = [1, 1]} : vector<8x128xf32> to vector<1x64xf32>
    %c0_26 = arith.constant 0 : index
    %c192 = arith.constant 192 : index
    %27 = vector.load %arg10[%c0_26, %c192] : memref<2x512xf32, #tpu.memory_space<vmem>>, vector<1x64xf32>
    tpu.vector_store %arg10[%c0_26, %c192], %26 {strides = array<i32>} : memref<2x512xf32, #tpu.memory_space<vmem>>, vector<1x64xf32>,
    %28 = vector.extract_strided_slice %19 {offsets = [4, 0], sizes = [1, 64], strides = [1, 1]} : vector<8x128xf32> to vector<1x64xf32>
    %c0_27 = arith.constant 0 : index
    %c256 = arith.constant 256 : index
    %29 = vector.load %arg10[%c0_27, %c256] : memref<2x512xf32, #tpu.memory_space<vmem>>, vector<1x64xf32>
    tpu.vector_store %arg10[%c0_27, %c256], %28 {strides = array<i32>} : memref<2x512xf32, #tpu.memory_space<vmem>>, vector<1x64xf32>,
    %30 = vector.extract_strided_slice %19 {offsets = [5, 0], sizes = [1, 64], strides = [1, 1]} : vector<8x128xf32> to vector<1x64xf32>
    %c0_28 = arith.constant 0 : index
    %c320 = arith.constant 320 : index
    %31 = vector.load %arg10[%c0_28, %c320] : memref<2x512xf32, #tpu.memory_space<vmem>>, vector<1x64xf32>
    tpu.vector_store %arg10[%c0_28, %c320], %30 {strides = array<i32>} : memref<2x512xf32, #tpu.memory_space<vmem>>, vector<1x64xf32>,
    %32 = vector.extract_strided_slice %19 {offsets = [6, 0], sizes = [1, 64], strides = [1, 1]} : vector<8x128xf32> to vector<1x64xf32>
    %c0_29 = arith.constant 0 : index
    %c384 = arith.constant 384 : index
    %33 = vector.load %arg10[%c0_29, %c384] : memref<2x512xf32, #tpu.memory_space<vmem>>, vector<1x64xf32>
    tpu.vector_store %arg10[%c0_29, %c384], %32 {strides = array<i32>} : memref<2x512xf32, #tpu.memory_space<vmem>>, vector<1x64xf32>,
    %34 = vector.extract_strided_slice %19 {offsets = [7, 0], sizes = [1, 64], strides = [1, 1]} : vector<8x128xf32> to vector<1x64xf32>
    %c0_30 = arith.constant 0 : index
    %c448 = arith.constant 448 : index
    %35 = vector.load %arg10[%c0_30, %c448] : memref<2x512xf32, #tpu.memory_space<vmem>>, vector<1x64xf32>
    tpu.vector_store %arg10[%c0_30, %c448], %34 {strides = array<i32>} : memref<2x512xf32, #tpu.memory_space<vmem>>, vector<1x64xf32>,
    %36 = vector.extract_strided_slice %19 {offsets = [0, 64], sizes = [1, 64], strides = [1, 1]} : vector<8x128xf32> to vector<1x64xf32>
    %c1_31 = arith.constant 1 : index
    %c0_32 = arith.constant 0 : index
    %37 = vector.load %arg10[%c1_31, %c0_32] : memref<2x512xf32, #tpu.memory_space<vmem>>, vector<1x64xf32>
    tpu.vector_store %arg10[%c1_31, %c0_32], %36 {strides = array<i32>} : memref<2x512xf32, #tpu.memory_space<vmem>>, vector<1x64xf32>,
    %38 = vector.extract_strided_slice %19 {offsets = [1, 64], sizes = [1, 64], strides = [1, 1]} : vector<8x128xf32> to vector<1x64xf32>
    %c1_33 = arith.constant 1 : index
    %c64_34 = arith.constant 64 : index
    %39 = vector.load %arg10[%c1_33, %c64_34] : memref<2x512xf32, #tpu.memory_space<vmem>>, vector<1x64xf32>
    tpu.vector_store %arg10[%c1_33, %c64_34], %38 {strides = array<i32>} : memref<2x512xf32, #tpu.memory_space<vmem>>, vector<1x64xf32>,
    %40 = vector.extract_strided_slice %19 {offsets = [2, 64], sizes = [1, 64], strides = [1, 1]} : vector<8x128xf32> to vector<1x64xf32>
    %c1_35 = arith.constant 1 : index
    %c128_36 = arith.constant 128 : index
    %41 = vector.load %arg10[%c1_35, %c128_36] : memref<2x512xf32, #tpu.memory_space<vmem>>, vector<1x64xf32>
    tpu.vector_store %arg10[%c1_35, %c128_36], %40 {strides = array<i32>} : memref<2x512xf32, #tpu.memory_space<vmem>>, vector<1x64xf32>,
    %42 = vector.extract_strided_slice %19 {offsets = [3, 64], sizes = [1, 64], strides = [1, 1]} : vector<8x128xf32> to vector<1x64xf32>
    %c1_37 = arith.constant 1 : index
    %c192_38 = arith.constant 192 : index
    %43 = vector.load %arg10[%c1_37, %c192_38] : memref<2x512xf32, #tpu.memory_space<vmem>>, vector<1x64xf32>
    tpu.vector_store %arg10[%c1_37, %c192_38], %42 {strides = array<i32>} : memref<2x512xf32, #tpu.memory_space<vmem>>, vector<1x64xf32>,
    %44 = vector.extract_strided_slice %19 {offsets = [4, 64], sizes = [1, 64], strides = [1, 1]} : vector<8x128xf32> to vector<1x64xf32>
    %c1_39 = arith.constant 1 : index
    %c256_40 = arith.constant 256 : index
    %45 = vector.load %arg10[%c1_39, %c256_40] : memref<2x512xf32, #tpu.memory_space<vmem>>, vector<1x64xf32>
    tpu.vector_store %arg10[%c1_39, %c256_40], %44 {strides = array<i32>} : memref<2x512xf32, #tpu.memory_space<vmem>>, vector<1x64xf32>,
    %46 = vector.extract_strided_slice %19 {offsets = [5, 64], sizes = [1, 64], strides = [1, 1]} : vector<8x128xf32> to vector<1x64xf32>
    %c1_41 = arith.constant 1 : index
    %c320_42 = arith.constant 320 : index
    %47 = vector.load %arg10[%c1_41, %c320_42] : memref<2x512xf32, #tpu.memory_space<vmem>>, vector<1x64xf32>
    tpu.vector_store %arg10[%c1_41, %c320_42], %46 {strides = array<i32>} : memref<2x512xf32, #tpu.memory_space<vmem>>, vector<1x64xf32>,
    %48 = vector.extract_strided_slice %19 {offsets = [6, 64], sizes = [1, 64], strides = [1, 1]} : vector<8x128xf32> to vector<1x64xf32>
    %c1_43 = arith.constant 1 : index
    %c384_44 = arith.constant 384 : index
    %49 = vector.load %arg10[%c1_43, %c384_44] : memref<2x512xf32, #tpu.memory_space<vmem>>, vector<1x64xf32>
    tpu.vector_store %arg10[%c1_43, %c384_44], %48 {strides = array<i32>} : memref<2x512xf32, #tpu.memory_space<vmem>>, vector<1x64xf32>,
    %50 = vector.extract_strided_slice %19 {offsets = [7, 64], sizes = [1, 64], strides = [1, 1]} : vector<8x128xf32> to vector<1x64xf32>
    %c1_45 = arith.constant 1 : index
    %c448_46 = arith.constant 448 : index
    %51 = vector.load %arg10[%c1_45, %c448_46] : memref<2x512xf32, #tpu.memory_space<vmem>>, vector<1x64xf32>
    tpu.vector_store %arg10[%c1_45, %c448_46], %50 {strides = array<i32>} : memref<2x512xf32, #tpu.memory_space<vmem>>, vector<1x64xf32>,
    %c0_47 = arith.constant 0 : index
    %c0_48 = arith.constant 0 : index
    %52 = vector.load %arg10[%c0_47, %c0_48] : memref<2x512xf32, #tpu.memory_space<vmem>>, vector<2x512xf32>
    %53 = arith.truncf %52 : vector<2x512xf32> to vector<2x512xbf16>
    %c0_49 = arith.constant 0 : index
    %c0_50 = arith.constant 0 : index
    %54 = vector.load %arg4[%c0_49, %c0_50] : memref<512x1024xbf16, #tpu.memory_space<vmem>>, vector<512x1024xbf16>
    %cst_51 = arith.constant dense<0.000000e+00> : vector<2x1024xf32>
    %55 = tpu.matmul %53, %54, %cst_51 {dimension_numbers = #tpu.dot_dimension_numbers<[1], [0], [0], [1], [0, 0, 1, 1], [], []>} : vector<2x512xbf16>, vector<512x1024xbf16>, vector<2x1024xf32> -> vector<2x1024xf32>
    %c0_52 = arith.constant 0 : index
    %c0_53 = arith.constant 0 : index
    %56 = vector.load %arg5[%c0_52, %c0_53] : memref<1x1024xf32, #tpu.memory_space<vmem>>, vector<1x1024xf32>
    %57 = vector.broadcast %56 : vector<1x1024xf32> to vector<2x1024xf32>
    %58 = arith.addf %55, %57 : vector<2x1024xf32>
    %cst_54 = arith.constant 0.000000e+00 : f32
    %59 = vector.broadcast %cst_54 : f32 to vector<2x1024xf32>
    %60 = arith.maximumf %58, %59 : vector<2x1024xf32>
    %c0_55 = arith.constant 0 : index
    %c0_56 = arith.constant 0 : index
    %61 = vector.load %arg6[%c0_55, %c0_56] : memref<1024x8xf32, #tpu.memory_space<vmem>>, vector<1024x8xf32>
    %cst_57 = arith.constant dense<0.000000e+00> : vector<2x8xf32>
    %62 = tpu.matmul %60, %61, %cst_57 {dimension_numbers = #tpu.dot_dimension_numbers<[1], [0], [0], [1], [0, 0, 1, 1], [], []>} : vector<2x1024xf32>, vector<1024x8xf32>, vector<2x8xf32> -> vector<2x8xf32>
    %c0_58 = arith.constant 0 : index
    %c0_59 = arith.constant 0 : index
    %63 = vector.load %arg7[%c0_58, %c0_59] : memref<1x8xf32, #tpu.memory_space<vmem>>, vector<1x8xf32>
    %64 = vector.broadcast %63 : vector<1x8xf32> to vector<2x8xf32>
    %65 = arith.addf %62, %64 : vector<2x8xf32>
    %c0_60 = arith.constant 0 : index
    %c0_61 = arith.constant 0 : index
    %66 = vector.load %arg8[%c0_60, %c0_61] : memref<2x8xf32, #tpu.memory_space<vmem>>, vector<2x8xf32>
    tpu.vector_store %arg8[%c0_60, %c0_61], %65 {strides = array<i32>} : memref<2x8xf32, #tpu.memory_space<vmem>>, vector<2x8xf32>,
    return
  }
}

</mosaic_0001>

<llo_original>
// kernel: multitask_convnet_forward.1
$region0: #{multitask_convnet_forward.1}
  #allocation0 [shape = 'u32[]', space=smem, size = 0x4, offset = 0x4, fixed_abs, tag = 'smem constant byte address 0x4 - core index']
  #allocation1 [shape = 'u32[72,128]{1,0:T(1,128)}', space=vmem, size = 0x9000, scoped, tag = 'internal scratch']
  #allocation2 [shape = 'f32[8,544]{1,0:T(8,128)}', space=vmem, size = 0x5000, scoped, tag = 'scratch operand']
  #allocation3 [shape = 'f32[2,512]{1,0:T(2,128)}', space=vmem, size = 0x1000, scoped, tag = 'scratch operand']
  %s0 = inlined_call_operand.vmem [shape: f32[36,512], index: 0, kind: input, shape index: {}]
  %s1 = inlined_call_operand.vmem [shape: f32[8,36], index: 1, kind: input, shape index: {}]
  %s2 = inlined_call_operand.vmem [shape: f32[8,1], index: 2, kind: input, shape index: {}]
  %s3 = inlined_call_operand.vmem [shape: f32[512,128], index: 3, kind: input, shape index: {}]
  %s4 = inlined_call_operand.vmem [shape: bf16[512,1024], index: 4, kind: input, shape index: {}]
  %s5 = inlined_call_operand.vmem [shape: f32[1,1024], index: 5, kind: input, shape index: {}]
  %s6 = inlined_call_operand.vmem [shape: f32[1024,8], index: 6, kind: input, shape index: {}]
  %s7 = inlined_call_operand.vmem [shape: f32[1,8], index: 7, kind: input, shape index: {}]
  %s8 = inlined_call_operand.vmem [shape: f32[2,8], index: 8, kind: output, shape index: {}]
  %s9 = sld [smem:[#allocation0]]
  $region42: #{multitask_convnet_forward.1} parent=0
    _
  %s11 = ssub.s32 1, %s9
  %s12 = scalar_select 0, %s11, %s9
  // Predicated region
  $region2: #{multitask_convnet_forward.1} parent=0 // pred_check
    _
  $region3: #{multitask_convnet_forward.1} parent=0 // pred_check_branch
    %14 = sbr.rel (0) target = $region5
  $region4: #{multitask_convnet_forward.1} parent=0 // pred_region
    _
  $region5: #{multitask_convnet_forward.1} parent=0 // pred_fallthru
    _
  // Predicated region
  $region6: #{multitask_convnet_forward.1} parent=0 // pred_check
    _
  $region7: #{multitask_convnet_forward.1} parent=0 // pred_check_branch
    %16 = sbr.rel (0) target = $region9
  $region8: #{multitask_convnet_forward.1} parent=0 // pred_region
    _
  $region9: #{multitask_convnet_forward.1} parent=0 // pred_fallthru
    _
  // Predicated region
  $region10: #{multitask_convnet_forward.1} parent=0 // pred_check
    _
  $region11: #{multitask_convnet_forward.1} parent=0 // pred_check_branch
    %18 = sbr.rel (0) target = $region13
  $region12: #{multitask_convnet_forward.1} parent=0 // pred_region
    _
  $region13: #{multitask_convnet_forward.1} parent=0 // pred_fallthru
    _
  // Predicated region
  $region14: #{multitask_convnet_forward.1} parent=0 // pred_check
    _
  $region15: #{multitask_convnet_forward.1} parent=0 // pred_check_branch
    %20 = sbr.rel (0) target = $region17
  $region16: #{multitask_convnet_forward.1} parent=0 // pred_region
    _
  $region17: #{multitask_convnet_forward.1} parent=0 // pred_fallthru
    _
  // Predicated region
  $region18: #{multitask_convnet_forward.1} parent=0 // pred_check
    _
  $region19: #{multitask_convnet_forward.1} parent=0 // pred_check_branch
    %22 = sbr.rel (0) target = $region21
  $region20: #{multitask_convnet_forward.1} parent=0 // pred_region
    _
  $region21: #{multitask_convnet_forward.1} parent=0 // pred_fallthru
    _
  // Predicated region
  $region22: #{multitask_convnet_forward.1} parent=0 // pred_check
    _
  $region23: #{multitask_convnet_forward.1} parent=0 // pred_check_branch
    %24 = sbr.rel (0) target = $region25
  $region24: #{multitask_convnet_forward.1} parent=0 // pred_region
    _
  $region25: #{multitask_convnet_forward.1} parent=0 // pred_fallthru
    _
  // Predicated region
  $region26: #{multitask_convnet_forward.1} parent=0 // pred_check
    _
  $region27: #{multitask_convnet_forward.1} parent=0 // pred_check_branch
    %26 = sbr.rel (0) target = $region29
  $region28: #{multitask_convnet_forward.1} parent=0 // pred_region
    _
  $region29: #{multitask_convnet_forward.1} parent=0 // pred_fallthru
    _
  // Predicated region
  $region30: #{multitask_convnet_forward.1} parent=0 // pred_check
    _
  $region31: #{multitask_convnet_forward.1} parent=0 // pred_check_branch
    %28 = sbr.rel (0) target = $region33
  $region32: #{multitask_convnet_forward.1} parent=0 // pred_region
    _
  $region33: #{multitask_convnet_forward.1} parent=0 // pred_fallthru
    _
  %v29 = vld [vmem:[%s1] sm:$0xff]
  %v30 = vld [vmem:[%s0] sm:$0xff]
  %v31 = vld [vmem:[%s0 + $0x8] sm:$0xff]
  %v32 = vld [vmem:[%s0 + $0x10] sm:$0xff]
  %v33 = vld [vmem:[%s0 + $0x18] sm:$0xff]
  %v34 = vld [vmem:[%s0 + $0x20] sm:$0xff]
  %v35 = vld [vmem:[%s0 + $0x28] sm:$0xff]
  %v36 = vld [vmem:[%s0 + $0x30] sm:$0xff]
  %v37 = vld [vmem:[%s0 + $0x38] sm:$0xff]
  %v38 = vld [vmem:[%s0 + $0x40] sm:$0xff]
  %v39 = vld [vmem:[%s0 + $0x48] sm:$0xff]
  %v40 = vld [vmem:[%s0 + $0x50] sm:$0xff]
  %v41 = vld [vmem:[%s0 + $0x58] sm:$0xff]
  %v42 = vld [vmem:[%s0 + $0x60] sm:$0xff]
  %v43 = vld [vmem:[%s0 + $0x68] sm:$0xff]
  %v44 = vld [vmem:[%s0 + $0x70] sm:$0xff]
  %v45 = vld [vmem:[%s0 + $0x78] sm:$0xff]
  %v46 = vld [vmem:[%s0 + $0x80] sm:$0xf]
  %v47 = vld [vmem:[%s0 + $0x88] sm:$0xf]
  %v48 = vld [vmem:[%s0 + $0x90] sm:$0xf]
  %v49 = vld [vmem:[%s0 + $0x98] sm:$0xf]
  %v50 = vld [vmem:[%s2] sm:$0xff]
  %52 = vset.pattern.permute.xlu0 0
  %53 = vperm.xlu0 %52, %v50
  %v54 = vpop.permute.xlu0 %53
  %vm56 = vcmask 293888
  %v58 = vsel %vm56, %v29, 0
  %vm60 = vcmask 1043456
  %v62 = vsel %vm60, %v46, 0
  %v65 = vsel %vm60, %v47, 0
  %v68 = vsel %vm60, %v48, 0
  %v71 = vsel %vm60, %v49, 0
  %73 = vmatpush.msra.mxu0 0.0
  %74 = vmatpush.msra.mxu0 0.0
  %75 = vmatpush.msra.mxu0 0.0
  %76 = vmatpush.msra.mxu0 0.0
  %77 = vmatpush.msra.mxu0 0.0
  %78 = vmatpush.msra.mxu0 0.0
  %79 = vmatpush.msra.mxu0 0.0
  %80 = vmatpush.msra.mxu0 0.0
  %81 = vmatpush.msra.mxu0 0.0
  %82 = vmatpush.msra.mxu0 0.0
  %83 = vmatpush.msra.mxu0 0.0
  %84 = vmatpush.msra.mxu0 %v62
  %85 = vmatpush.msra.mxu0 %v42
  %86 = vmatpush.msra.mxu0 %v38
  %87 = vmatpush.msra.mxu0 %v34
  %88 = vmatpush.msra.mxu0 %v30
  %89 = vmatmul.f32.gmra.mxu0 %v58
  %v90 = vpop.f32.mrf.mxu0
  %v91 = vadd.f32 %v54, %v90
  %92 = vdwg.mxu0
  %93 = vmatpush.msra.mxu0 0.0
  %94 = vmatpush.msra.mxu0 0.0
  %95 = vmatpush.msra.mxu0 0.0
  %96 = vmatpush.msra.mxu0 0.0
  %97 = vmatpush.msra.mxu0 0.0
  %98 = vmatpush.msra.mxu0 0.0
  %99 = vmatpush.msra.mxu0 0.0
  %100 = vmatpush.msra.mxu0 0.0
  %101 = vmatpush.msra.mxu0 0.0
  %102 = vmatpush.msra.mxu0 0.0
  %103 = vmatpush.msra.mxu0 0.0
  %104 = vmatpush.msra.mxu0 %v65
  %105 = vmatpush.msra.mxu0 %v43
  %106 = vmatpush.msra.mxu0 %v39
  %107 = vmatpush.msra.mxu0 %v35
  %108 = vmatpush.msra.mxu0 %v31
  %109 = vmatmul.f32.gmra.mxu0 %v58
  %v110 = vpop.f32.mrf.mxu0
  %v111 = vadd.f32 %v54, %v110
  %112 = vdwg.mxu0
  %113 = vmatpush.msra.mxu0 0.0
  %114 = vmatpush.msra.mxu0 0.0
  %115 = vmatpush.msra.mxu0 0.0
  %116 = vmatpush.msra.mxu0 0.0
  %117 = vmatpush.msra.mxu0 0.0
  %118 = vmatpush.msra.mxu0 0.0
  %119 = vmatpush.msra.mxu0 0.0
  %120 = vmatpush.msra.mxu0 0.0
  %121 = vmatpush.msra.mxu0 0.0
  %122 = vmatpush.msra.mxu0 0.0
  %123 = vmatpush.msra.mxu0 0.0
  %124 = vmatpush.msra.mxu0 %v68
  %125 = vmatpush.msra.mxu0 %v44
  %126 = vmatpush.msra.mxu0 %v40
  %127 = vmatpush.msra.mxu0 %v36
  %128 = vmatpush.msra.mxu0 %v32
  %129 = vmatmul.f32.gmra.mxu0 %v58
  %v130 = vpop.f32.mrf.mxu0
  %v131 = vadd.f32 %v54, %v130
  %132 = vdwg.mxu0
  %133 = vmatpush.msra.mxu0 0.0
  %134 = vmatpush.msra.mxu0 0.0
  %135 = vmatpush.msra.mxu0 0.0
  %136 = vmatpush.msra.mxu0 0.0
  %137 = vmatpush.msra.mxu0 0.0
  %138 = vmatpush.msra.mxu0 0.0
  %139 = vmatpush.msra.mxu0 0.0
  %140 = vmatpush.msra.mxu0 0.0
  %141 = vmatpush.msra.mxu0 0.0
  %142 = vmatpush.msra.mxu0 0.0
  %143 = vmatpush.msra.mxu0 0.0
  %144 = vmatpush.msra.mxu0 %v71
  %145 = vmatpush.msra.mxu0 %v45
  %146 = vmatpush.msra.mxu0 %v41
  %147 = vmatpush.msra.mxu0 %v37
  %148 = vmatpush.msra.mxu0 %v33
  %149 = vmatmul.f32.gmra.mxu0 %v58
  %v150 = vpop.f32.mrf.mxu0
  %v151 = vadd.f32 %v54, %v150
  %152 = vdwg.mxu0
  %v153 = vmax.f32 %v91, 0.0
  %v154 = vmax.f32 %v111, 0.0
  %v155 = vmax.f32 %v131, 0.0
  %v156 = vmax.f32 %v151, 0.0
  %157 = vst [vmem:[#allocation2] sm:$0xff] 0.0
  %158 = vst [vmem:[#allocation2 + $0x8] sm:$0xff] 0.0
  %159 = vst [vmem:[#allocation2 + $0x10] sm:$0xff] 0.0
  %160 = vst [vmem:[#allocation2 + $0x18] sm:$0xff] 0.0
  %vm161 = vcmask 261120
  %162 = vst.msk [vmem:[#allocation2 + $0x20] sm:$0xff] %vm161, 0.0
  %163 = vst [vmem:[#allocation2] sm:$0xff] %v153
  %164 = vst [vmem:[#allocation2 + $0x8] sm:$0xff] %v154
  %165 = vst [vmem:[#allocation2 + $0x10] sm:$0xff] %v155
  %166 = vst [vmem:[#allocation2 + $0x18] sm:$0xff] %v156
  %v167 = vld [vmem:[#allocation2] sm:$0xff]
  %v168 = vld [vmem:[#allocation2 + $0x8] sm:$0xff]
  %v169 = vld [vmem:[#allocation2 + $0x10] sm:$0xff]
  %v170 = vld [vmem:[#allocation2 + $0x18] sm:$0xff]
  %v171 = vld [vmem:[#allocation2 + $0x20] sm:$0xff]
  %177 = vrot.lane.b32.xlu0 %v167, 127
  %v178 = vpop.permute.xlu0 %177
  %179 = vrot.lane.b32.xlu0 %v168, 127
  %v180 = vpop.permute.xlu0 %179
  %181 = vrot.lane.b32.xlu0 %v169, 127
  %v182 = vpop.permute.xlu0 %181
  %183 = vrot.lane.b32.xlu0 %v170, 127
  %v184 = vpop.permute.xlu0 %183
  %185 = vrot.lane.b32.xlu0 %v171, 127
  %v186 = vpop.permute.xlu0 %185
  %vm187 = vcmask 1039360
  %v188 = vsel %vm187, %v178, %v180
  %v189 = vsel %vm187, %v180, %v182
  %v190 = vsel %vm187, %v182, %v184
  %v191 = vsel %vm187, %v184, %v186
  %v196 = vmax.f32 %v167, %v188
  %v197 = vmax.f32 %v168, %v189
  %v198 = vmax.f32 %v169, %v190
  %v199 = vmax.f32 %v170, %v191
  %200 = vst [vmem:[#allocation2] sm:$0xff] %v196
  %201 = vst [vmem:[#allocation2 + $0x8] sm:$0xff] %v197
  %202 = vst [vmem:[#allocation2 + $0x10] sm:$0xff] %v198
  %203 = vst [vmem:[#allocation2 + $0x18] sm:$0xff] %v199
  %v204 = vld [vmem:[#allocation2] sm:$0xff]
  %v205 = vld [vmem:[#allocation2 + $0x8] sm:$0xff]
  %v206 = vld [vmem:[#allocation2 + $0x10] sm:$0xff]
  %v207 = vld [vmem:[#allocation2 + $0x18] sm:$0xff]
  %v208 = vld [vmem:[#allocation2 + $0x20] sm:$0xff]
  %214 = vrot.lane.b32.xlu0 %v204, 112
  %v215 = vpop.permute.xlu0 %214
  %216 = vrot.lane.b32.xlu0 %v205, 112
  %v217 = vpop.permute.xlu0 %216
  %218 = vrot.lane.b32.xlu0 %v206, 112
  %v219 = vpop.permute.xlu0 %218
  %220 = vrot.lane.b32.xlu0 %v207, 112
  %v221 = vpop.permute.xlu0 %220
  %222 = vrot.lane.b32.xlu0 %v208, 112
  %v223 = vpop.permute.xlu0 %222
  %vm224 = vcmask 916480
  %v225 = vsel %vm224, %v215, %v217
  %v226 = vsel %vm224, %v217, %v219
  %v227 = vsel %vm224, %v219, %v221
  %v228 = vsel %vm224, %v221, %v223
  %v233 = vmax.f32 %v204, %v225
  %v234 = vmax.f32 %v205, %v226
  %v235 = vmax.f32 %v206, %v227
  %v236 = vmax.f32 %v207, %v228
  %v237 = vld [vmem:[%s3] sm:$0xff]
  %v238 = vld [vmem:[%s3 + $0x8] sm:$0xff]
  %v239 = vld [vmem:[%s3 + $0x10] sm:$0xff]
  %v240 = vld [vmem:[%s3 + $0x18] sm:$0xff]
  %v241 = vld [vmem:[%s3 + $0x20] sm:$0xff]
  %v242 = vld [vmem:[%s3 + $0x28] sm:$0xff]
  %v243 = vld [vmem:[%s3 + $0x30] sm:$0xff]
  %v244 = vld [vmem:[%s3 + $0x38] sm:$0xff]
  %v245 = vld [vmem:[%s3 + $0x40] sm:$0xff]
  %v246 = vld [vmem:[%s3 + $0x48] sm:$0xff]
  %v247 = vld [vmem:[%s3 + $0x50] sm:$0xff]
  %v248 = vld [vmem:[%s3 + $0x58] sm:$0xff]
  %v249 = vld [vmem:[%s3 + $0x60] sm:$0xff]
  %v250 = vld [vmem:[%s3 + $0x68] sm:$0xff]
  %v251 = vld [vmem:[%s3 + $0x70] sm:$0xff]
  %v252 = vld [vmem:[%s3 + $0x78] sm:$0xff]
  %v253 = vld [vmem:[%s3 + $0x80] sm:$0xff]
  %v254 = vld [vmem:[%s3 + $0x88] sm:$0xff]
  %v255 = vld [vmem:[%s3 + $0x90] sm:$0xff]
  %v256 = vld [vmem:[%s3 + $0x98] sm:$0xff]
  %v257 = vld [vmem:[%s3 + $0xa0] sm:$0xff]
  %v258 = vld [vmem:[%s3 + $0xa8] sm:$0xff]
  %v259 = vld [vmem:[%s3 + $0xb0] sm:$0xff]
  %v260 = vld [vmem:[%s3 + $0xb8] sm:$0xff]
  %v261 = vld [vmem:[%s3 + $0xc0] sm:$0xff]
  %v262 = vld [vmem:[%s3 + $0xc8] sm:$0xff]
  %v263 = vld [vmem:[%s3 + $0xd0] sm:$0xff]
  %v264 = vld [vmem:[%s3 + $0xd8] sm:$0xff]
  %v265 = vld [vmem:[%s3 + $0xe0] sm:$0xff]
  %v266 = vld [vmem:[%s3 + $0xe8] sm:$0xff]
  %v267 = vld [vmem:[%s3 + $0xf0] sm:$0xff]
  %v268 = vld [vmem:[%s3 + $0xf8] sm:$0xff]
  %v269 = vld [vmem:[%s3 + $0x100] sm:$0xff]
  %v270 = vld [vmem:[%s3 + $0x108] sm:$0xff]
  %v271 = vld [vmem:[%s3 + $0x110] sm:$0xff]
  %v272 = vld [vmem:[%s3 + $0x118] sm:$0xff]
  %v273 = vld [vmem:[%s3 + $0x120] sm:$0xff]
  %v274 = vld [vmem:[%s3 + $0x128] sm:$0xff]
  %v275 = vld [vmem:[%s3 + $0x130] sm:$0xff]
  %v276 = vld [vmem:[%s3 + $0x138] sm:$0xff]
  %v277 = vld [vmem:[%s3 + $0x140] sm:$0xff]
  %v278 = vld [vmem:[%s3 + $0x148] sm:$0xff]
  %v279 = vld [vmem:[%s3 + $0x150] sm:$0xff]
  %v280 = vld [vmem:[%s3 + $0x158] sm:$0xff]
  %v281 = vld [vmem:[%s3 + $0x160] sm:$0xff]
  %v282 = vld [vmem:[%s3 + $0x168] sm:$0xff]
  %v283 = vld [vmem:[%s3 + $0x170] sm:$0xff]
  %v284 = vld [vmem:[%s3 + $0x178] sm:$0xff]
  %v285 = vld [vmem:[%s3 + $0x180] sm:$0xff]
  %v286 = vld [vmem:[%s3 + $0x188] sm:$0xff]
  %v287 = vld [vmem:[%s3 + $0x190] sm:$0xff]
  %v288 = vld [vmem:[%s3 + $0x198] sm:$0xff]
  %v289 = vld [vmem:[%s3 + $0x1a0] sm:$0xff]
  %v290 = vld [vmem:[%s3 + $0x1a8] sm:$0xff]
  %v291 = vld [vmem:[%s3 + $0x1b0] sm:$0xff]
  %v292 = vld [vmem:[%s3 + $0x1b8] sm:$0xff]
  %v293 = vld [vmem:[%s3 + $0x1c0] sm:$0xff]
  %v294 = vld [vmem:[%s3 + $0x1c8] sm:$0xff]
  %v295 = vld [vmem:[%s3 + $0x1d0] sm:$0xff]
  %v296 = vld [vmem:[%s3 + $0x1d8] sm:$0xff]
  %v297 = vld [vmem:[%s3 + $0x1e0] sm:$0xff]
  %v298 = vld [vmem:[%s3 + $0x1e8] sm:$0xff]
  %v299 = vld [vmem:[%s3 + $0x1f0] sm:$0xff]
  %v300 = vld [vmem:[%s3 + $0x1f8] sm:$0xff]
  %301 = vmatpush.msra.mxu0 %v252
  %302 = vmatpush.msra.mxu0 %v251
  %303 = vmatpush.msra.mxu0 %v250
  %304 = vmatpush.msra.mxu0 %v249
  %305 = vmatpush.msra.mxu0 %v248
  %306 = vmatpush.msra.mxu0 %v247
  %307 = vmatpush.msra.mxu0 %v246
  %308 = vmatpush.msra.mxu0 %v245
  %309 = vmatpush.msra.mxu0 %v244
  %310 = vmatpush.msra.mxu0 %v243
  %311 = vmatpush.msra.mxu0 %v242
  %312 = vmatpush.msra.mxu0 %v241
  %313 = vmatpush.msra.mxu0 %v240
  %314 = vmatpush.msra.mxu0 %v239
  %315 = vmatpush.msra.mxu0 %v238
  %316 = vmatpush.msra.mxu0 %v237
  %317 = vmatmul.f32.gmra.mxu0 %v233
  %v318 = vpop.f32.mrf.mxu0
  %v319 = vadd.f32 0.0, %v318
  %320 = vdwg.mxu0
  %321 = vmatpush.msra.mxu0 %v268
  %322 = vmatpush.msra.mxu0 %v267
  %323 = vmatpush.msra.mxu0 %v266
  %324 = vmatpush.msra.mxu0 %v265
  %325 = vmatpush.msra.mxu0 %v264
  %326 = vmatpush.msra.mxu0 %v263
  %327 = vmatpush.msra.mxu0 %v262
  %328 = vmatpush.msra.mxu0 %v261
  %329 = vmatpush.msra.mxu0 %v260
  %330 = vmatpush.msra.mxu0 %v259
  %331 = vmatpush.msra.mxu0 %v258
  %332 = vmatpush.msra.mxu0 %v257
  %333 = vmatpush.msra.mxu0 %v256
  %334 = vmatpush.msra.mxu0 %v255
  %335 = vmatpush.msra.mxu0 %v254
  %336 = vmatpush.msra.mxu0 %v253
  %337 = vmatmul.f32.gmra.mxu0 %v234
  %v338 = vpop.f32.mrf.mxu0
  %v339 = vadd.f32 %v319, %v338
  %340 = vdwg.mxu0
  %341 = vmatpush.msra.mxu0 %v284
  %342 = vmatpush.msra.mxu0 %v283
  %343 = vmatpush.msra.mxu0 %v282
  %344 = vmatpush.msra.mxu0 %v281
  %345 = vmatpush.msra.mxu0 %v280
  %346 = vmatpush.msra.mxu0 %v279
  %347 = vmatpush.msra.mxu0 %v278
  %348 = vmatpush.msra.mxu0 %v277
  %349 = vmatpush.msra.mxu0 %v276
  %350 = vmatpush.msra.mxu0 %v275
  %351 = vmatpush.msra.mxu0 %v274
  %352 = vmatpush.msra.mxu0 %v273
  %353 = vmatpush.msra.mxu0 %v272
  %354 = vmatpush.msra.mxu0 %v271
  %355 = vmatpush.msra.mxu0 %v270
  %356 = vmatpush.msra.mxu0 %v269
  %357 = vmatmul.f32.gmra.mxu0 %v235
  %v358 = vpop.f32.mrf.mxu0
  %v359 = vadd.f32 %v339, %v358
  %360 = vdwg.mxu0
  %361 = vmatpush.msra.mxu0 %v300
  %362 = vmatpush.msra.mxu0 %v299
  %363 = vmatpush.msra.mxu0 %v298
  %364 = vmatpush.msra.mxu0 %v297
  %365 = vmatpush.msra.mxu0 %v296
  %366 = vmatpush.msra.mxu0 %v295
  %367 = vmatpush.msra.mxu0 %v294
  %368 = vmatpush.msra.mxu0 %v293
  %369 = vmatpush.msra.mxu0 %v292
  %370 = vmatpush.msra.mxu0 %v291
  %371 = vmatpush.msra.mxu0 %v290
  %372 = vmatpush.msra.mxu0 %v289
  %373 = vmatpush.msra.mxu0 %v288
  %374 = vmatpush.msra.mxu0 %v287
  %375 = vmatpush.msra.mxu0 %v286
  %376 = vmatpush.msra.mxu0 %v285
  %377 = vmatmul.f32.gmra.mxu0 %v236
  %v378 = vpop.f32.mrf.mxu0
  %v379 = vadd.f32 %v359, %v378
  %380 = vdwg.mxu0
  %vm381 = vcmask 516096
  %382 = vst.msk [vmem:[#allocation3] sm:$0x1] %vm381, %v379
  %v384 = vrot.slane %v379, 7
  %v385 = vrot.slane %v384, 2
  %386 = vrot.lane.b32.xlu0 %v385, 64
  %v387 = vpop.permute.xlu0 %386
  %vm389 = vcmask 1040896
  %390 = vst.msk [vmem:[#allocation3] sm:$0x1] %vm389, %v387
  %391 = vst.sshfl [vmem:[#allocation1] sm:$0xff pattern:$0x73625140] %v379
  %s392 = scalar_lea.vmem [#allocation1], 1
  %v393 = vld [vmem:[%s392] ss:$4 sm:$0xff]
  %395 = vst.msk [vmem:[#allocation3 + $0x2] sm:$0x1] %vm381, %v393
  %396 = vst.sshfl [vmem:[#allocation1] sm:$0xff pattern:$0x73625140] %v379
  %s397 = scalar_lea.vmem [#allocation1], 1
  %v398 = vld [vmem:[%s397] ss:$4 sm:$0xff]
  %v399 = vrot.slane %v398, 7
  %v400 = vrot.slane %v399, 2
  %401 = vrot.lane.b32.xlu0 %v400, 64
  %v402 = vpop.permute.xlu0 %401
  %404 = vst.msk [vmem:[#allocation3 + $0x2] sm:$0x1] %vm389, %v402
  %405 = vst.sshfl [vmem:[#allocation1] sm:$0xff pattern:$0x73625140] %v379
  %s406 = scalar_lea.vmem [#allocation1], 2
  %v407 = vld [vmem:[%s406] ss:$4 sm:$0xff]
  %409 = vst.msk [vmem:[#allocation3 + $0x4] sm:$0x1] %vm381, %v407
  %410 = vst.sshfl [vmem:[#allocation1] sm:$0xff pattern:$0x73625140] %v379
  %s411 = scalar_lea.vmem [#allocation1], 2
  %v412 = vld [vmem:[%s411] ss:$4 sm:$0xff]
  %v413 = vrot.slane %v412, 7
  %v414 = vrot.slane %v413, 2
  %415 = vrot.lane.b32.xlu0 %v414, 64
  %v416 = vpop.permute.xlu0 %415
  %418 = vst.msk [vmem:[#allocation3 + $0x4] sm:$0x1] %vm389, %v416
  %419 = vst.sshfl [vmem:[#allocation1] sm:$0xff pattern:$0x73625140] %v379
  %s420 = scalar_lea.vmem [#allocation1], 3
  %v421 = vld [vmem:[%s420] ss:$4 sm:$0xff]
  %423 = vst.msk [vmem:[#allocation3 + $0x6] sm:$0x1] %vm381, %v421
  %424 = vst.sshfl [vmem:[#allocation1] sm:$0xff pattern:$0x73625140] %v379
  %s425 = scalar_lea.vmem [#allocation1], 3
  %v426 = vld [vmem:[%s425] ss:$4 sm:$0xff]
  %v427 = vrot.slane %v426, 7
  %v428 = vrot.slane %v427, 2
  %429 = vrot.lane.b32.xlu0 %v428, 64
  %v430 = vpop.permute.xlu0 %429
  %432 = vst.msk [vmem:[#allocation3 + $0x6] sm:$0x1] %vm389, %v430
  %433 = vrot.lane.b32.xlu0 %v379, 64
  %v434 = vpop.permute.xlu0 %433
  %436 = vst.msk [vmem:[#allocation3 + $0x1] sm:$0x1] %vm381, %v434
  %438 = vst.msk [vmem:[#allocation3 + $0x1] sm:$0x1] %vm389, %v385
  %439 = vst.sshfl [vmem:[#allocation1] sm:$0xff pattern:$0x73625140] %v379
  %s440 = scalar_lea.vmem [#allocation1], 1
  %v441 = vld [vmem:[%s440] ss:$4 sm:$0xff]
  %442 = vrot.lane.b32.xlu0 %v441, 64
  %v443 = vpop.permute.xlu0 %442
  %445 = vst.msk [vmem:[#allocation3 + $0x3] sm:$0x1] %vm381, %v443
  %446 = vst.sshfl [vmem:[#allocation1] sm:$0xff pattern:$0x73625140] %v379
  %s447 = scalar_lea.vmem [#allocation1], 1
  %v448 = vld [vmem:[%s447] ss:$4 sm:$0xff]
  %v449 = vrot.slane %v448, 7
  %v450 = vrot.slane %v449, 2
  %452 = vst.msk [vmem:[#allocation3 + $0x3] sm:$0x1] %vm389, %v450
  %453 = vst.sshfl [vmem:[#allocation1] sm:$0xff pattern:$0x73625140] %v379
  %s454 = scalar_lea.vmem [#allocation1], 2
  %v455 = vld [vmem:[%s454] ss:$4 sm:$0xff]
  %456 = vrot.lane.b32.xlu0 %v455, 64
  %v457 = vpop.permute.xlu0 %456
  %459 = vst.msk [vmem:[#allocation3 + $0x5] sm:$0x1] %vm381, %v457
  %460 = vst.sshfl [vmem:[#allocation1] sm:$0xff pattern:$0x73625140] %v379
  %s461 = scalar_lea.vmem [#allocation1], 2
  %v462 = vld [vmem:[%s461] ss:$4 sm:$0xff]
  %v463 = vrot.slane %v462, 7
  %v464 = vrot.slane %v463, 2
  %466 = vst.msk [vmem:[#allocation3 + $0x5] sm:$0x1] %vm389, %v464
  %467 = vst.sshfl [vmem:[#allocation1] sm:$0xff pattern:$0x73625140] %v379
  %s468 = scalar_lea.vmem [#allocation1], 3
  %v469 = vld [vmem:[%s468] ss:$4 sm:$0xff]
  %470 = vrot.lane.b32.xlu0 %v469, 64
  %v471 = vpop.permute.xlu0 %470
  %473 = vst.msk [vmem:[#allocation3 + $0x7] sm:$0x1] %vm381, %v471
  %474 = vst.sshfl [vmem:[#allocation1] sm:$0xff pattern:$0x73625140] %v379
  %s475 = scalar_lea.vmem [#allocation1], 3
  %v476 = vld [vmem:[%s475] ss:$4 sm:$0xff]
  %v477 = vrot.slane %v476, 7
  %v478 = vrot.slane %v477, 2
  %480 = vst.msk [vmem:[#allocation3 + $0x7] sm:$0x1] %vm389, %v478
  %v481 = vld [vmem:[#allocation3] sm:$0xff]
  %483 = vst [vmem:[#allocation1] ss:$4 sm:$0xff] %v481
  %v484 = vld.sshfl [vmem:[#allocation1] sm:$0xff pattern:$0x73625140]
  %v485 = vld.sshfl [vmem:[#allocation1 + $0x8] sm:$0xff pattern:$0x73625140]
  %v486 = vld.sshfl [vmem:[#allocation1 + $0x10] sm:$0xff pattern:$0x73625140]
  %v487 = vld.sshfl [vmem:[#allocation1 + $0x18] sm:$0xff pattern:$0x73625140]
  %v492 = vpack.c.bf16 %v484, %v484
  %v493 = vpack.c.bf16 %v485, %v485
  %v494 = vpack.c.bf16 %v486, %v486
  %v495 = vpack.c.bf16 %v487, %v487
  %v496 = vld [vmem:[%s4] sm:$0xff]
  %v497 = vld [vmem:[%s4 + $0x8] sm:$0xff]
  %v498 = vld [vmem:[%s4 + $0x10] sm:$0xff]
  %v499 = vld [vmem:[%s4 + $0x18] sm:$0xff]
  %v500 = vld [vmem:[%s4 + $0x20] sm:$0xff]
  %v501 = vld [vmem:[%s4 + $0x28] sm:$0xff]
  %v502 = vld [vmem:[%s4 + $0x30] sm:$0xff]
  %v503 = vld [vmem:[%s4 + $0x38] sm:$0xff]
  %v504 = vld [vmem:[%s4 + $0x40] sm:$0xff]
  %v505 = vld [vmem:[%s4 + $0x48] sm:$0xff]
  %v506 = vld [vmem:[%s4 + $0x50] sm:$0xff]
  %v507 = vld [vmem:[%s4 + $0x58] sm:$0xff]
  %v508 = vld [vmem:[%s4 + $0x60] sm:$0xff]
  %v509 = vld [vmem:[%s4 + $0x68] sm:$0xff]
  %v510 = vld [vmem:[%s4 + $0x70] sm:$0xff]
  %v511 = vld [vmem:[%s4 + $0x78] sm:$0xff]
  %v512 = vld [vmem:[%s4 + $0x80] sm:$0xff]
  %v513 = vld [vmem:[%s4 + $0x88] sm:$0xff]
  %v514 = vld [vmem:[%s4 + $0x90] sm:$0xff]
  %v515 = vld [vmem:[%s4 + $0x98] sm:$0xff]
  %v516 = vld [vmem:[%s4 + $0xa0] sm:$0xff]
  %v517 = vld [vmem:[%s4 + $0xa8] sm:$0xff]
  %v518 = vld [vmem:[%s4 + $0xb0] sm:$0xff]
  %v519 = vld [vmem:[%s4 + $0xb8] sm:$0xff]
  %v520 = vld [vmem:[%s4 + $0xc0] sm:$0xff]
  %v521 = vld [vmem:[%s4 + $0xc8] sm:$0xff]
  %v522 = vld [vmem:[%s4 + $0xd0] sm:$0xff]
  %v523 = vld [vmem:[%s4 + $0xd8] sm:$0xff]
  %v524 = vld [vmem:[%s4 + $0xe0] sm:$0xff]
  %v525 = vld [vmem:[%s4 + $0xe8] sm:$0xff]
  %v526 = vld [vmem:[%s4 + $0xf0] sm:$0xff]
  %v527 = vld [vmem:[%s4 + $0xf8] sm:$0xff]
  %v528 = vld [vmem:[%s4 + $0x100] sm:$0xff]
  %v529 = vld [vmem:[%s4 + $0x108] sm:$0xff]
  %v530 = vld [vmem:[%s4 + $0x110] sm:$0xff]
  %v531 = vld [vmem:[%s4 + $0x118] sm:$0xff]
  %v532 = vld [vmem:[%s4 + $0x120] sm:$0xff]
  %v533 = vld [vmem:[%s4 + $0x128] sm:$0xff]
  %v534 = vld [vmem:[%s4 + $0x130] sm:$0xff]
  %v535 = vld [vmem:[%s4 + $0x138] sm:$0xff]
  %v536 = vld [vmem:[%s4 + $0x140] sm:$0xff]
  %v537 = vld [vmem:[%s4 + $0x148] sm:$0xff]
  %v538 = vld [vmem:[%s4 + $0x150] sm:$0xff]
  %v539 = vld [vmem:[%s4 + $0x158] sm:$0xff]
  %v540 = vld [vmem:[%s4 + $0x160] sm:$0xff]
  %v541 = vld [vmem:[%s4 + $0x168] sm:$0xff]
  %v542 = vld [vmem:[%s4 + $0x170] sm:$0xff]
  %v543 = vld [vmem:[%s4 + $0x178] sm:$0xff]
  %v544 = vld [vmem:[%s4 + $0x180] sm:$0xff]
  %v545 = vld [vmem:[%s4 + $0x188] sm:$0xff]
  %v546 = vld [vmem:[%s4 + $0x190] sm:$0xff]
  %v547 = vld [vmem:[%s4 + $0x198] sm:$0xff]
  %v548 = vld [vmem:[%s4 + $0x1a0] sm:$0xff]
  %v549 = vld [vmem:[%s4 + $0x1a8] sm:$0xff]
  %v550 = vld [vmem:[%s4 + $0x1b0] sm:$0xff]
  %v551 = vld [vmem:[%s4 + $0x1b8] sm:$0xff]
  %v552 = vld [vmem:[%s4 + $0x1c0] sm:$0xff]
  %v553 = vld [vmem:[%s4 + $0x1c8] sm:$0xff]
  %v554 = vld [vmem:[%s4 + $0x1d0] sm:$0xff]
  %v555 = vld [vmem:[%s4 + $0x1d8] sm:$0xff]
  %v556 = vld [vmem:[%s4 + $0x1e0] sm:$0xff]
  %v557 = vld [vmem:[%s4 + $0x1e8] sm:$0xff]
  %v558 = vld [vmem:[%s4 + $0x1f0] sm:$0xff]
  %v559 = vld [vmem:[%s4 + $0x1f8] sm:$0xff]
  %v560 = vld [vmem:[%s4 + $0x200] sm:$0xff]
  %v561 = vld [vmem:[%s4 + $0x208] sm:$0xff]
  %v562 = vld [vmem:[%s4 + $0x210] sm:$0xff]
  %v563 = vld [vmem:[%s4 + $0x218] sm:$0xff]
  %v564 = vld [vmem:[%s4 + $0x220] sm:$0xff]
  %v565 = vld [vmem:[%s4 + $0x228] sm:$0xff]
  %v566 = vld [vmem:[%s4 + $0x230] sm:$0xff]
  %v567 = vld [vmem:[%s4 + $0x238] sm:$0xff]
  %v568 = vld [vmem:[%s4 + $0x240] sm:$0xff]
  %v569 = vld [vmem:[%s4 + $0x248] sm:$0xff]
  %v570 = vld [vmem:[%s4 + $0x250] sm:$0xff]
  %v571 = vld [vmem:[%s4 + $0x258] sm:$0xff]
  %v572 = vld [vmem:[%s4 + $0x260] sm:$0xff]
  %v573 = vld [vmem:[%s4 + $0x268] sm:$0xff]
  %v574 = vld [vmem:[%s4 + $0x270] sm:$0xff]
  %v575 = vld [vmem:[%s4 + $0x278] sm:$0xff]
  %v576 = vld [vmem:[%s4 + $0x280] sm:$0xff]
  %v577 = vld [vmem:[%s4 + $0x288] sm:$0xff]
  %v578 = vld [vmem:[%s4 + $0x290] sm:$0xff]
  %v579 = vld [vmem:[%s4 + $0x298] sm:$0xff]
  %v580 = vld [vmem:[%s4 + $0x2a0] sm:$0xff]
  %v581 = vld [vmem:[%s4 + $0x2a8] sm:$0xff]
  %v582 = vld [vmem:[%s4 + $0x2b0] sm:$0xff]
  %v583 = vld [vmem:[%s4 + $0x2b8] sm:$0xff]
  %v584 = vld [vmem:[%s4 + $0x2c0] sm:$0xff]
  %v585 = vld [vmem:[%s4 + $0x2c8] sm:$0xff]
  %v586 = vld [vmem:[%s4 + $0x2d0] sm:$0xff]
  %v587 = vld [vmem:[%s4 + $0x2d8] sm:$0xff]
  %v588 = vld [vmem:[%s4 + $0x2e0] sm:$0xff]
  %v589 = vld [vmem:[%s4 + $0x2e8] sm:$0xff]
  %v590 = vld [vmem:[%s4 + $0x2f0] sm:$0xff]
  %v591 = vld [vmem:[%s4 + $0x2f8] sm:$0xff]
  %v592 = vld [vmem:[%s4 + $0x300] sm:$0xff]
  %v593 = vld [vmem:[%s4 + $0x308] sm:$0xff]
  %v594 = vld [vmem:[%s4 + $0x310] sm:$0xff]
  %v595 = vld [vmem:[%s4 + $0x318] sm:$0xff]
  %v596 = vld [vmem:[%s4 + $0x320] sm:$0xff]
  %v597 = vld [vmem:[%s4 + $0x328] sm:$0xff]
  %v598 = vld [vmem:[%s4 + $0x330] sm:$0xff]
  %v599 = vld [vmem:[%s4 + $0x338] sm:$0xff]
  %v600 = vld [vmem:[%s4 + $0x340] sm:$0xff]
  %v601 = vld [vmem:[%s4 + $0x348] sm:$0xff]
  %v602 = vld [vmem:[%s4 + $0x350] sm:$0xff]
  %v603 = vld [vmem:[%s4 + $0x358] sm:$0xff]
  %v604 = vld [vmem:[%s4 + $0x360] sm:$0xff]
  %v605 = vld [vmem:[%s4 + $0x368] sm:$0xff]
  %v606 = vld [vmem:[%s4 + $0x370] sm:$0xff]
  %v607 = vld [vmem:[%s4 + $0x378] sm:$0xff]
  %v608 = vld [vmem:[%s4 + $0x380] sm:$0xff]
  %v609 = vld [vmem:[%s4 + $0x388] sm:$0xff]
  %v610 = vld [vmem:[%s4 + $0x390] sm:$0xff]
  %v611 = vld [vmem:[%s4 + $0x398] sm:$0xff]
  %v612 = vld [vmem:[%s4 + $0x3a0] sm:$0xff]
  %v613 = vld [vmem:[%s4 + $0x3a8] sm:$0xff]
  %v614 = vld [vmem:[%s4 + $0x3b0] sm:$0xff]
  %v615 = vld [vmem:[%s4 + $0x3b8] sm:$0xff]
  %v616 = vld [vmem:[%s4 + $0x3c0] sm:$0xff]
  %v617 = vld [vmem:[%s4 + $0x3c8] sm:$0xff]
  %v618 = vld [vmem:[%s4 + $0x3d0] sm:$0xff]
  %v619 = vld [vmem:[%s4 + $0x3d8] sm:$0xff]
  %v620 = vld [vmem:[%s4 + $0x3e0] sm:$0xff]
  %v621 = vld [vmem:[%s4 + $0x3e8] sm:$0xff]
  %v622 = vld [vmem:[%s4 + $0x3f0] sm:$0xff]
  %v623 = vld [vmem:[%s4 + $0x3f8] sm:$0xff]
  %v624 = vld [vmem:[%s4 + $0x400] sm:$0xff]
  %v625 = vld [vmem:[%s4 + $0x408] sm:$0xff]
  %v626 = vld [vmem:[%s4 + $0x410] sm:$0xff]
  %v627 = vld [vmem:[%s4 + $0x418] sm:$0xff]
  %v628 = vld [vmem:[%s4 + $0x420] sm:$0xff]
  %v629 = vld [vmem:[%s4 + $0x428] sm:$0xff]
  %v630 = vld [vmem:[%s4 + $0x430] sm:$0xff]
  %v631 = vld [vmem:[%s4 + $0x438] sm:$0xff]
  %v632 = vld [vmem:[%s4 + $0x440] sm:$0xff]
  %v633 = vld [vmem:[%s4 + $0x448] sm:$0xff]
  %v634 = vld [vmem:[%s4 + $0x450] sm:$0xff]
  %v635 = vld [vmem:[%s4 + $0x458] sm:$0xff]
  %v636 = vld [vmem:[%s4 + $0x460] sm:$0xff]
  %v637 = vld [vmem:[%s4 + $0x468] sm:$0xff]
  %v638 = vld [vmem:[%s4 + $0x470] sm:$0xff]
  %v639 = vld [vmem:[%s4 + $0x478] sm:$0xff]
  %v640 = vld [vmem:[%s4 + $0x480] sm:$0xff]
  %v641 = vld [vmem:[%s4 + $0x488] sm:$0xff]
  %v642 = vld [vmem:[%s4 + $0x490] sm:$0xff]
  %v643 = vld [vmem:[%s4 + $0x498] sm:$0xff]
  %v644 = vld [vmem:[%s4 + $0x4a0] sm:$0xff]
  %v645 = vld [vmem:[%s4 + $0x4a8] sm:$0xff]
  %v646 = vld [vmem:[%s4 + $0x4b0] sm:$0xff]
  %v647 = vld [vmem:[%s4 + $0x4b8] sm:$0xff]
  %v648 = vld [vmem:[%s4 + $0x4c0] sm:$0xff]
  %v649 = vld [vmem:[%s4 + $0x4c8] sm:$0xff]
  %v650 = vld [vmem:[%s4 + $0x4d0] sm:$0xff]
  %v651 = vld [vmem:[%s4 + $0x4d8] sm:$0xff]
  %v652 = vld [vmem:[%s4 + $0x4e0] sm:$0xff]
  %v653 = vld [vmem:[%s4 + $0x4e8] sm:$0xff]
  %v654 = vld [vmem:[%s4 + $0x4f0] sm:$0xff]
  %v655 = vld [vmem:[%s4 + $0x4f8] sm:$0xff]
  %v656 = vld [vmem:[%s4 + $0x500] sm:$0xff]
  %v657 = vld [vmem:[%s4 + $0x508] sm:$0xff]
  %v658 = vld [vmem:[%s4 + $0x510] sm:$0xff]
  %v659 = vld [vmem:[%s4 + $0x518] sm:$0xff]
  %v660 = vld [vmem:[%s4 + $0x520] sm:$0xff]
  %v661 = vld [vmem:[%s4 + $0x528] sm:$0xff]
  %v662 = vld [vmem:[%s4 + $0x530] sm:$0xff]
  %v663 = vld [vmem:[%s4 + $0x538] sm:$0xff]
  %v664 = vld [vmem:[%s4 + $0x540] sm:$0xff]
  %v665 = vld [vmem:[%s4 + $0x548] sm:$0xff]
  %v666 = vld [vmem:[%s4 + $0x550] sm:$0xff]
  %v667 = vld [vmem:[%s4 + $0x558] sm:$0xff]
  %v668 = vld [vmem:[%s4 + $0x560] sm:$0xff]
  %v669 = vld [vmem:[%s4 + $0x568] sm:$0xff]
  %v670 = vld [vmem:[%s4 + $0x570] sm:$0xff]
  %v671 = vld [vmem:[%s4 + $0x578] sm:$0xff]
  %v672 = vld [vmem:[%s4 + $0x580] sm:$0xff]
  %v673 = vld [vmem:[%s4 + $0x588] sm:$0xff]
  %v674 = vld [vmem:[%s4 + $0x590] sm:$0xff]
  %v675 = vld [vmem:[%s4 + $0x598] sm:$0xff]
  %v676 = vld [vmem:[%s4 + $0x5a0] sm:$0xff]
  %v677 = vld [vmem:[%s4 + $0x5a8] sm:$0xff]
  %v678 = vld [vmem:[%s4 + $0x5b0] sm:$0xff]
  %v679 = vld [vmem:[%s4 + $0x5b8] sm:$0xff]
  %v680 = vld [vmem:[%s4 + $0x5c0] sm:$0xff]
  %v681 = vld [vmem:[%s4 + $0x5c8] sm:$0xff]
  %v682 = vld [vmem:[%s4 + $0x5d0] sm:$0xff]
  %v683 = vld [vmem:[%s4 + $0x5d8] sm:$0xff]
  %v684 = vld [vmem:[%s4 + $0x5e0] sm:$0xff]
  %v685 = vld [vmem:[%s4 + $0x5e8] sm:$0xff]
  %v686 = vld [vmem:[%s4 + $0x5f0] sm:$0xff]
  %v687 = vld [vmem:[%s4 + $0x5f8] sm:$0xff]
  %v688 = vld [vmem:[%s4 + $0x600] sm:$0xff]
  %v689 = vld [vmem:[%s4 + $0x608] sm:$0xff]
  %v690 = vld [vmem:[%s4 + $0x610] sm:$0xff]
  %v691 = vld [vmem:[%s4 + $0x618] sm:$0xff]
  %v692 = vld [vmem:[%s4 + $0x620] sm:$0xff]
  %v693 = vld [vmem:[%s4 + $0x628] sm:$0xff]
  %v694 = vld [vmem:[%s4 + $0x630] sm:$0xff]
  %v695 = vld [vmem:[%s4 + $0x638] sm:$0xff]
  %v696 = vld [vmem:[%s4 + $0x640] sm:$0xff]
  %v697 = vld [vmem:[%s4 + $0x648] sm:$0xff]
  %v698 = vld [vmem:[%s4 + $0x650] sm:$0xff]
  %v699 = vld [vmem:[%s4 + $0x658] sm:$0xff]
  %v700 = vld [vmem:[%s4 + $0x660] sm:$0xff]
  %v701 = vld [vmem:[%s4 + $0x668] sm:$0xff]
  %v702 = vld [vmem:[%s4 + $0x670] sm:$0xff]
  %v703 = vld [vmem:[%s4 + $0x678] sm:$0xff]
  %v704 = vld [vmem:[%s4 + $0x680] sm:$0xff]
  %v705 = vld [vmem:[%s4 + $0x688] sm:$0xff]
  %v706 = vld [vmem:[%s4 + $0x690] sm:$0xff]
  %v707 = vld [vmem:[%s4 + $0x698] sm:$0xff]
  %v708 = vld [vmem:[%s4 + $0x6a0] sm:$0xff]
  %v709 = vld [vmem:[%s4 + $0x6a8] sm:$0xff]
  %v710 = vld [vmem:[%s4 + $0x6b0] sm:$0xff]
  %v711 = vld [vmem:[%s4 + $0x6b8] sm:$0xff]
  %v712 = vld [vmem:[%s4 + $0x6c0] sm:$0xff]
  %v713 = vld [vmem:[%s4 + $0x6c8] sm:$0xff]
  %v714 = vld [vmem:[%s4 + $0x6d0] sm:$0xff]
  %v715 = vld [vmem:[%s4 + $0x6d8] sm:$0xff]
  %v716 = vld [vmem:[%s4 + $0x6e0] sm:$0xff]
  %v717 = vld [vmem:[%s4 + $0x6e8] sm:$0xff]
  %v718 = vld [vmem:[%s4 + $0x6f0] sm:$0xff]
  %v719 = vld [vmem:[%s4 + $0x6f8] sm:$0xff]
  %v720 = vld [vmem:[%s4 + $0x700] sm:$0xff]
  %v721 = vld [vmem:[%s4 + $0x708] sm:$0xff]
  %v722 = vld [vmem:[%s4 + $0x710] sm:$0xff]
  %v723 = vld [vmem:[%s4 + $0x718] sm:$0xff]
  %v724 = vld [vmem:[%s4 + $0x720] sm:$0xff]
  %v725 = vld [vmem:[%s4 + $0x728] sm:$0xff]
  %v726 = vld [vmem:[%s4 + $0x730] sm:$0xff]
  %v727 = vld [vmem:[%s4 + $0x738] sm:$0xff]
  %v728 = vld [vmem:[%s4 + $0x740] sm:$0xff]
  %v729 = vld [vmem:[%s4 + $0x748] sm:$0xff]
  %v730 = vld [vmem:[%s4 + $0x750] sm:$0xff]
  %v731 = vld [vmem:[%s4 + $0x758] sm:$0xff]
  %v732 = vld [vmem:[%s4 + $0x760] sm:$0xff]
  %v733 = vld [vmem:[%s4 + $0x768] sm:$0xff]
  %v734 = vld [vmem:[%s4 + $0x770] sm:$0xff]
  %v735 = vld [vmem:[%s4 + $0x778] sm:$0xff]
  %v736 = vld [vmem:[%s4 + $0x780] sm:$0xff]
  %v737 = vld [vmem:[%s4 + $0x788] sm:$0xff]
  %v738 = vld [vmem:[%s4 + $0x790] sm:$0xff]
  %v739 = vld [vmem:[%s4 + $0x798] sm:$0xff]
  %v740 = vld [vmem:[%s4 + $0x7a0] sm:$0xff]
  %v741 = vld [vmem:[%s4 + $0x7a8] sm:$0xff]
  %v742 = vld [vmem:[%s4 + $0x7b0] sm:$0xff]
  %v743 = vld [vmem:[%s4 + $0x7b8] sm:$0xff]
  %v744 = vld [vmem:[%s4 + $0x7c0] sm:$0xff]
  %v745 = vld [vmem:[%s4 + $0x7c8] sm:$0xff]
  %v746 = vld [vmem:[%s4 + $0x7d0] sm:$0xff]
  %v747 = vld [vmem:[%s4 + $0x7d8] sm:$0xff]
  %v748 = vld [vmem:[%s4 + $0x7e0] sm:$0xff]
  %v749 = vld [vmem:[%s4 + $0x7e8] sm:$0xff]
  %v750 = vld [vmem:[%s4 + $0x7f0] sm:$0xff]
  %v751 = vld [vmem:[%s4 + $0x7f8] sm:$0xff]
  %v752 = vld [vmem:[%s5] sm:$0xff]
  %v754 = vperm.slane %v752, 0
  %v755 = vperm.slane %v752, 1
  %v756 = vperm.slane %v752, 2
  %v757 = vperm.slane %v752, 3
  %v758 = vperm.slane %v752, 4
  %v759 = vperm.slane %v752, 5
  %v760 = vperm.slane %v752, 6
  %v761 = vperm.slane %v752, 7
  %v1026 = vunpack.c.l.b16 %v496
  %v1027 = vunpack.c.h.b16 %v496
  %v1028 = vunpack.c.l.b16 %v497
  %v1029 = vunpack.c.h.b16 %v497
  %v1030 = vunpack.c.l.b16 %v498
  %v1031 = vunpack.c.h.b16 %v498
  %v1032 = vunpack.c.l.b16 %v499
  %v1033 = vunpack.c.h.b16 %v499
  %v1034 = vunpack.c.l.b16 %v500
  %v1035 = vunpack.c.h.b16 %v500
  %v1036 = vunpack.c.l.b16 %v501
  %v1037 = vunpack.c.h.b16 %v501
  %v1038 = vunpack.c.l.b16 %v502
  %v1039 = vunpack.c.h.b16 %v502
  %v1040 = vunpack.c.l.b16 %v503
  %v1041 = vunpack.c.h.b16 %v503
  %v1042 = vunpack.c.l.b16 %v504
  %v1043 = vunpack.c.h.b16 %v504
  %v1044 = vunpack.c.l.b16 %v505
  %v1045 = vunpack.c.h.b16 %v505
  %v1046 = vunpack.c.l.b16 %v506
  %v1047 = vunpack.c.h.b16 %v506
  %v1048 = vunpack.c.l.b16 %v507
  %v1049 = vunpack.c.h.b16 %v507
  %v1050 = vunpack.c.l.b16 %v508
  %v1051 = vunpack.c.h.b16 %v508
  %v1052 = vunpack.c.l.b16 %v509
  %v1053 = vunpack.c.h.b16 %v509
  %v1054 = vunpack.c.l.b16 %v510
  %v1055 = vunpack.c.h.b16 %v510
  %v1056 = vunpack.c.l.b16 %v511
  %v1057 = vunpack.c.h.b16 %v511
  %v1058 = vunpack.c.l.b16 %v512
  %v1059 = vunpack.c.h.b16 %v512
  %v1060 = vunpack.c.l.b16 %v513
  %v1061 = vunpack.c.h.b16 %v513
  %v1062 = vunpack.c.l.b16 %v514
  %v1063 = vunpack.c.h.b16 %v514
  %v1064 = vunpack.c.l.b16 %v515
  %v1065 = vunpack.c.h.b16 %v515
  %v1066 = vunpack.c.l.b16 %v516
  %v1067 = vunpack.c.h.b16 %v516
  %v1068 = vunpack.c.l.b16 %v517
  %v1069 = vunpack.c.h.b16 %v517
  %v1070 = vunpack.c.l.b16 %v518
  %v1071 = vunpack.c.h.b16 %v518
  %v1072 = vunpack.c.l.b16 %v519
  %v1073 = vunpack.c.h.b16 %v519
  %v1074 = vunpack.c.l.b16 %v520
  %v1075 = vunpack.c.h.b16 %v520
  %v1076 = vunpack.c.l.b16 %v521
  %v1077 = vunpack.c.h.b16 %v521
  %v1078 = vunpack.c.l.b16 %v522
  %v1079 = vunpack.c.h.b16 %v522
  %v1080 = vunpack.c.l.b16 %v523
  %v1081 = vunpack.c.h.b16 %v523
  %v1082 = vunpack.c.l.b16 %v524
  %v1083 = vunpack.c.h.b16 %v524
  %v1084 = vunpack.c.l.b16 %v525
  %v1085 = vunpack.c.h.b16 %v525
  %v1086 = vunpack.c.l.b16 %v526
  %v1087 = vunpack.c.h.b16 %v526
  %v1088 = vunpack.c.l.b16 %v527
  %v1089 = vunpack.c.h.b16 %v527
  %v1090 = vunpack.c.l.b16 %v528
  %v1091 = vunpack.c.h.b16 %v528
  %v1092 = vunpack.c.l.b16 %v529
  %v1093 = vunpack.c.h.b16 %v529
  %v1094 = vunpack.c.l.b16 %v530
  %v1095 = vunpack.c.h.b16 %v530
  %v1096 = vunpack.c.l.b16 %v531
  %v1097 = vunpack.c.h.b16 %v531
  %v1098 = vunpack.c.l.b16 %v532
  %v1099 = vunpack.c.h.b16 %v532
  %v1100 = vunpack.c.l.b16 %v533
  %v1101 = vunpack.c.h.b16 %v533
  %v1102 = vunpack.c.l.b16 %v534
  %v1103 = vunpack.c.h.b16 %v534
  %v1104 = vunpack.c.l.b16 %v535
  %v1105 = vunpack.c.h.b16 %v535
  %v1106 = vunpack.c.l.b16 %v536
  %v1107 = vunpack.c.h.b16 %v536
  %v1108 = vunpack.c.l.b16 %v537
  %v1109 = vunpack.c.h.b16 %v537
  %v1110 = vunpack.c.l.b16 %v538
  %v1111 = vunpack.c.h.b16 %v538
  %v1112 = vunpack.c.l.b16 %v539
  %v1113 = vunpack.c.h.b16 %v539
  %v1114 = vunpack.c.l.b16 %v540
  %v1115 = vunpack.c.h.b16 %v540
  %v1116 = vunpack.c.l.b16 %v541
  %v1117 = vunpack.c.h.b16 %v541
  %v1118 = vunpack.c.l.b16 %v542
  %v1119 = vunpack.c.h.b16 %v542
  %v1120 = vunpack.c.l.b16 %v543
  %v1121 = vunpack.c.h.b16 %v543
  %v1122 = vunpack.c.l.b16 %v544
  %v1123 = vunpack.c.h.b16 %v544
  %v1124 = vunpack.c.l.b16 %v545
  %v1125 = vunpack.c.h.b16 %v545
  %v1126 = vunpack.c.l.b16 %v546
  %v1127 = vunpack.c.h.b16 %v546
  %v1128 = vunpack.c.l.b16 %v547
  %v1129 = vunpack.c.h.b16 %v547
  %v1130 = vunpack.c.l.b16 %v548
  %v1131 = vunpack.c.h.b16 %v548
  %v1132 = vunpack.c.l.b16 %v549
  %v1133 = vunpack.c.h.b16 %v549
  %v1134 = vunpack.c.l.b16 %v550
  %v1135 = vunpack.c.h.b16 %v550
  %v1136 = vunpack.c.l.b16 %v551
  %v1137 = vunpack.c.h.b16 %v551
  %v1138 = vunpack.c.l.b16 %v552
  %v1139 = vunpack.c.h.b16 %v552
  %v1140 = vunpack.c.l.b16 %v553
  %v1141 = vunpack.c.h.b16 %v553
  %v1142 = vunpack.c.l.b16 %v554
  %v1143 = vunpack.c.h.b16 %v554
  %v1144 = vunpack.c.l.b16 %v555
  %v1145 = vunpack.c.h.b16 %v555
  %v1146 = vunpack.c.l.b16 %v556
  %v1147 = vunpack.c.h.b16 %v556
  %v1148 = vunpack.c.l.b16 %v557
  %v1149 = vunpack.c.h.b16 %v557
  %v1150 = vunpack.c.l.b16 %v558
  %v1151 = vunpack.c.h.b16 %v558
  %v1152 = vunpack.c.l.b16 %v559
  %v1153 = vunpack.c.h.b16 %v559
  %v1154 = vunpack.c.l.b16 %v560
  %v1155 = vunpack.c.h.b16 %v560
  %v1156 = vunpack.c.l.b16 %v561
  %v1157 = vunpack.c.h.b16 %v561
  %v1158 = vunpack.c.l.b16 %v562
  %v1159 = vunpack.c.h.b16 %v562
  %v1160 = vunpack.c.l.b16 %v563
  %v1161 = vunpack.c.h.b16 %v563
  %v1162 = vunpack.c.l.b16 %v564
  %v1163 = vunpack.c.h.b16 %v564
  %v1164 = vunpack.c.l.b16 %v565
  %v1165 = vunpack.c.h.b16 %v565
  %v1166 = vunpack.c.l.b16 %v566
  %v1167 = vunpack.c.h.b16 %v566
  %v1168 = vunpack.c.l.b16 %v567
  %v1169 = vunpack.c.h.b16 %v567
  %v1170 = vunpack.c.l.b16 %v568
  %v1171 = vunpack.c.h.b16 %v568
  %v1172 = vunpack.c.l.b16 %v569
  %v1173 = vunpack.c.h.b16 %v569
  %v1174 = vunpack.c.l.b16 %v570
  %v1175 = vunpack.c.h.b16 %v570
  %v1176 = vunpack.c.l.b16 %v571
  %v1177 = vunpack.c.h.b16 %v571
  %v1178 = vunpack.c.l.b16 %v572
  %v1179 = vunpack.c.h.b16 %v572
  %v1180 = vunpack.c.l.b16 %v573
  %v1181 = vunpack.c.h.b16 %v573
  %v1182 = vunpack.c.l.b16 %v574
  %v1183 = vunpack.c.h.b16 %v574
  %v1184 = vunpack.c.l.b16 %v575
  %v1185 = vunpack.c.h.b16 %v575
  %v1186 = vunpack.c.l.b16 %v576
  %v1187 = vunpack.c.h.b16 %v576
  %v1188 = vunpack.c.l.b16 %v577
  %v1189 = vunpack.c.h.b16 %v577
  %v1190 = vunpack.c.l.b16 %v578
  %v1191 = vunpack.c.h.b16 %v578
  %v1192 = vunpack.c.l.b16 %v579
  %v1193 = vunpack.c.h.b16 %v579
  %v1194 = vunpack.c.l.b16 %v580
  %v1195 = vunpack.c.h.b16 %v580
  %v1196 = vunpack.c.l.b16 %v581
  %v1197 = vunpack.c.h.b16 %v581
  %v1198 = vunpack.c.l.b16 %v582
  %v1199 = vunpack.c.h.b16 %v582
  %v1200 = vunpack.c.l.b16 %v583
  %v1201 = vunpack.c.h.b16 %v583
  %v1202 = vunpack.c.l.b16 %v584
  %v1203 = vunpack.c.h.b16 %v584
  %v1204 = vunpack.c.l.b16 %v585
  %v1205 = vunpack.c.h.b16 %v585
  %v1206 = vunpack.c.l.b16 %v586
  %v1207 = vunpack.c.h.b16 %v586
  %v1208 = vunpack.c.l.b16 %v587
  %v1209 = vunpack.c.h.b16 %v587
  %v1210 = vunpack.c.l.b16 %v588
  %v1211 = vunpack.c.h.b16 %v588
  %v1212 = vunpack.c.l.b16 %v589
  %v1213 = vunpack.c.h.b16 %v589
  %v1214 = vunpack.c.l.b16 %v590
  %v1215 = vunpack.c.h.b16 %v590
  %v1216 = vunpack.c.l.b16 %v591
  %v1217 = vunpack.c.h.b16 %v591
  %v1218 = vunpack.c.l.b16 %v592
  %v1219 = vunpack.c.h.b16 %v592
  %v1220 = vunpack.c.l.b16 %v593
  %v1221 = vunpack.c.h.b16 %v593
  %v1222 = vunpack.c.l.b16 %v594
  %v1223 = vunpack.c.h.b16 %v594
  %v1224 = vunpack.c.l.b16 %v595
  %v1225 = vunpack.c.h.b16 %v595
  %v1226 = vunpack.c.l.b16 %v596
  %v1227 = vunpack.c.h.b16 %v596
  %v1228 = vunpack.c.l.b16 %v597
  %v1229 = vunpack.c.h.b16 %v597
  %v1230 = vunpack.c.l.b16 %v598
  %v1231 = vunpack.c.h.b16 %v598
  %v1232 = vunpack.c.l.b16 %v599
  %v1233 = vunpack.c.h.b16 %v599
  %v1234 = vunpack.c.l.b16 %v600
  %v1235 = vunpack.c.h.b16 %v600
  %v1236 = vunpack.c.l.b16 %v601
  %v1237 = vunpack.c.h.b16 %v601
  %v1238 = vunpack.c.l.b16 %v602
  %v1239 = vunpack.c.h.b16 %v602
  %v1240 = vunpack.c.l.b16 %v603
  %v1241 = vunpack.c.h.b16 %v603
  %v1242 = vunpack.c.l.b16 %v604
  %v1243 = vunpack.c.h.b16 %v604
  %v1244 = vunpack.c.l.b16 %v605
  %v1245 = vunpack.c.h.b16 %v605
  %v1246 = vunpack.c.l.b16 %v606
  %v1247 = vunpack.c.h.b16 %v606
  %v1248 = vunpack.c.l.b16 %v607
  %v1249 = vunpack.c.h.b16 %v607
  %v1250 = vunpack.c.l.b16 %v608
  %v1251 = vunpack.c.h.b16 %v608
  %v1252 = vunpack.c.l.b16 %v609
  %v1253 = vunpack.c.h.b16 %v609
  %v1254 = vunpack.c.l.b16 %v610
  %v1255 = vunpack.c.h.b16 %v610
  %v1256 = vunpack.c.l.b16 %v611
  %v1257 = vunpack.c.h.b16 %v611
  %v1258 = vunpack.c.l.b16 %v612
  %v1259 = vunpack.c.h.b16 %v612
  %v1260 = vunpack.c.l.b16 %v613
  %v1261 = vunpack.c.h.b16 %v613
  %v1262 = vunpack.c.l.b16 %v614
  %v1263 = vunpack.c.h.b16 %v614
  %v1264 = vunpack.c.l.b16 %v615
  %v1265 = vunpack.c.h.b16 %v615
  %v1266 = vunpack.c.l.b16 %v616
  %v1267 = vunpack.c.h.b16 %v616
  %v1268 = vunpack.c.l.b16 %v617
  %v1269 = vunpack.c.h.b16 %v617
  %v1270 = vunpack.c.l.b16 %v618
  %v1271 = vunpack.c.h.b16 %v618
  %v1272 = vunpack.c.l.b16 %v619
  %v1273 = vunpack.c.h.b16 %v619
  %v1274 = vunpack.c.l.b16 %v620
  %v1275 = vunpack.c.h.b16 %v620
  %v1276 = vunpack.c.l.b16 %v621
  %v1277 = vunpack.c.h.b16 %v621
  %v1278 = vunpack.c.l.b16 %v622
  %v1279 = vunpack.c.h.b16 %v622
  %v1280 = vunpack.c.l.b16 %v623
  %v1281 = vunpack.c.h.b16 %v623
  %v1282 = vunpack.c.l.b16 %v624
  %v1283 = vunpack.c.h.b16 %v624
  %v1284 = vunpack.c.l.b16 %v625
  %v1285 = vunpack.c.h.b16 %v625
  %v1286 = vunpack.c.l.b16 %v626
  %v1287 = vunpack.c.h.b16 %v626
  %v1288 = vunpack.c.l.b16 %v627
  %v1289 = vunpack.c.h.b16 %v627
  %v1290 = vunpack.c.l.b16 %v628
  %v1291 = vunpack.c.h.b16 %v628
  %v1292 = vunpack.c.l.b16 %v629
  %v1293 = vunpack.c.h.b16 %v629
  %v1294 = vunpack.c.l.b16 %v630
  %v1295 = vunpack.c.h.b16 %v630
  %v1296 = vunpack.c.l.b16 %v631
  %v1297 = vunpack.c.h.b16 %v631
  %v1298 = vunpack.c.l.b16 %v632
  %v1299 = vunpack.c.h.b16 %v632
  %v1300 = vunpack.c.l.b16 %v633
  %v1301 = vunpack.c.h.b16 %v633
  %v1302 = vunpack.c.l.b16 %v634
  %v1303 = vunpack.c.h.b16 %v634
  %v1304 = vunpack.c.l.b16 %v635
  %v1305 = vunpack.c.h.b16 %v635
  %v1306 = vunpack.c.l.b16 %v636
  %v1307 = vunpack.c.h.b16 %v636
  %v1308 = vunpack.c.l.b16 %v637
  %v1309 = vunpack.c.h.b16 %v637
  %v1310 = vunpack.c.l.b16 %v638
  %v1311 = vunpack.c.h.b16 %v638
  %v1312 = vunpack.c.l.b16 %v639
  %v1313 = vunpack.c.h.b16 %v639
  %v1314 = vunpack.c.l.b16 %v640
  %v1315 = vunpack.c.h.b16 %v640
  %v1316 = vunpack.c.l.b16 %v641
  %v1317 = vunpack.c.h.b16 %v641
  %v1318 = vunpack.c.l.b16 %v642
  %v1319 = vunpack.c.h.b16 %v642
  %v1320 = vunpack.c.l.b16 %v643
  %v1321 = vunpack.c.h.b16 %v643
  %v1322 = vunpack.c.l.b16 %v644
  %v1323 = vunpack.c.h.b16 %v644
  %v1324 = vunpack.c.l.b16 %v645
  %v1325 = vunpack.c.h.b16 %v645
  %v1326 = vunpack.c.l.b16 %v646
  %v1327 = vunpack.c.h.b16 %v646
  %v1328 = vunpack.c.l.b16 %v647
  %v1329 = vunpack.c.h.b16 %v647
  %v1330 = vunpack.c.l.b16 %v648
  %v1331 = vunpack.c.h.b16 %v648
  %v1332 = vunpack.c.l.b16 %v649
  %v1333 = vunpack.c.h.b16 %v649
  %v1334 = vunpack.c.l.b16 %v650
  %v1335 = vunpack.c.h.b16 %v650
  %v1336 = vunpack.c.l.b16 %v651
  %v1337 = vunpack.c.h.b16 %v651
  %v1338 = vunpack.c.l.b16 %v652
  %v1339 = vunpack.c.h.b16 %v652
  %v1340 = vunpack.c.l.b16 %v653
  %v1341 = vunpack.c.h.b16 %v653
  %v1342 = vunpack.c.l.b16 %v654
  %v1343 = vunpack.c.h.b16 %v654
  %v1344 = vunpack.c.l.b16 %v655
  %v1345 = vunpack.c.h.b16 %v655
  %v1346 = vunpack.c.l.b16 %v656
  %v1347 = vunpack.c.h.b16 %v656
  %v1348 = vunpack.c.l.b16 %v657
  %v1349 = vunpack.c.h.b16 %v657
  %v1350 = vunpack.c.l.b16 %v658
  %v1351 = vunpack.c.h.b16 %v658
  %v1352 = vunpack.c.l.b16 %v659
  %v1353 = vunpack.c.h.b16 %v659
  %v1354 = vunpack.c.l.b16 %v660
  %v1355 = vunpack.c.h.b16 %v660
  %v1356 = vunpack.c.l.b16 %v661
  %v1357 = vunpack.c.h.b16 %v661
  %v1358 = vunpack.c.l.b16 %v662
  %v1359 = vunpack.c.h.b16 %v662
  %v1360 = vunpack.c.l.b16 %v663
  %v1361 = vunpack.c.h.b16 %v663
  %v1362 = vunpack.c.l.b16 %v664
  %v1363 = vunpack.c.h.b16 %v664
  %v1364 = vunpack.c.l.b16 %v665
  %v1365 = vunpack.c.h.b16 %v665
  %v1366 = vunpack.c.l.b16 %v666
  %v1367 = vunpack.c.h.b16 %v666
  %v1368 = vunpack.c.l.b16 %v667
  %v1369 = vunpack.c.h.b16 %v667
  %v1370 = vunpack.c.l.b16 %v668
  %v1371 = vunpack.c.h.b16 %v668
  %v1372 = vunpack.c.l.b16 %v669
  %v1373 = vunpack.c.h.b16 %v669
  %v1374 = vunpack.c.l.b16 %v670
  %v1375 = vunpack.c.h.b16 %v670
  %v1376 = vunpack.c.l.b16 %v671
  %v1377 = vunpack.c.h.b16 %v671
  %v1378 = vunpack.c.l.b16 %v672
  %v1379 = vunpack.c.h.b16 %v672
  %v1380 = vunpack.c.l.b16 %v673
  %v1381 = vunpack.c.h.b16 %v673
  %v1382 = vunpack.c.l.b16 %v674
  %v1383 = vunpack.c.h.b16 %v674
  %v1384 = vunpack.c.l.b16 %v675
  %v1385 = vunpack.c.h.b16 %v675
  %v1386 = vunpack.c.l.b16 %v676
  %v1387 = vunpack.c.h.b16 %v676
  %v1388 = vunpack.c.l.b16 %v677
  %v1389 = vunpack.c.h.b16 %v677
  %v1390 = vunpack.c.l.b16 %v678
  %v1391 = vunpack.c.h.b16 %v678
  %v1392 = vunpack.c.l.b16 %v679
  %v1393 = vunpack.c.h.b16 %v679
  %v1394 = vunpack.c.l.b16 %v680
  %v1395 = vunpack.c.h.b16 %v680
  %v1396 = vunpack.c.l.b16 %v681
  %v1397 = vunpack.c.h.b16 %v681
  %v1398 = vunpack.c.l.b16 %v682
  %v1399 = vunpack.c.h.b16 %v682
  %v1400 = vunpack.c.l.b16 %v683
  %v1401 = vunpack.c.h.b16 %v683
  %v1402 = vunpack.c.l.b16 %v684
  %v1403 = vunpack.c.h.b16 %v684
  %v1404 = vunpack.c.l.b16 %v685
  %v1405 = vunpack.c.h.b16 %v685
  %v1406 = vunpack.c.l.b16 %v686
  %v1407 = vunpack.c.h.b16 %v686
  %v1408 = vunpack.c.l.b16 %v687
  %v1409 = vunpack.c.h.b16 %v687
  %v1410 = vunpack.c.l.b16 %v688
  %v1411 = vunpack.c.h.b16 %v688
  %v1412 = vunpack.c.l.b16 %v689
  %v1413 = vunpack.c.h.b16 %v689
  %v1414 = vunpack.c.l.b16 %v690
  %v1415 = vunpack.c.h.b16 %v690
  %v1416 = vunpack.c.l.b16 %v691
  %v1417 = vunpack.c.h.b16 %v691
  %v1418 = vunpack.c.l.b16 %v692
  %v1419 = vunpack.c.h.b16 %v692
  %v1420 = vunpack.c.l.b16 %v693
  %v1421 = vunpack.c.h.b16 %v693
  %v1422 = vunpack.c.l.b16 %v694
  %v1423 = vunpack.c.h.b16 %v694
  %v1424 = vunpack.c.l.b16 %v695
  %v1425 = vunpack.c.h.b16 %v695
  %v1426 = vunpack.c.l.b16 %v696
  %v1427 = vunpack.c.h.b16 %v696
  %v1428 = vunpack.c.l.b16 %v697
  %v1429 = vunpack.c.h.b16 %v697
  %v1430 = vunpack.c.l.b16 %v698
  %v1431 = vunpack.c.h.b16 %v698
  %v1432 = vunpack.c.l.b16 %v699
  %v1433 = vunpack.c.h.b16 %v699
  %v1434 = vunpack.c.l.b16 %v700
  %v1435 = vunpack.c.h.b16 %v700
  %v1436 = vunpack.c.l.b16 %v701
  %v1437 = vunpack.c.h.b16 %v701
  %v1438 = vunpack.c.l.b16 %v702
  %v1439 = vunpack.c.h.b16 %v702
  %v1440 = vunpack.c.l.b16 %v703
  %v1441 = vunpack.c.h.b16 %v703
  %v1442 = vunpack.c.l.b16 %v704
  %v1443 = vunpack.c.h.b16 %v704
  %v1444 = vunpack.c.l.b16 %v705
  %v1445 = vunpack.c.h.b16 %v705
  %v1446 = vunpack.c.l.b16 %v706
  %v1447 = vunpack.c.h.b16 %v706
  %v1448 = vunpack.c.l.b16 %v707
  %v1449 = vunpack.c.h.b16 %v707
  %v1450 = vunpack.c.l.b16 %v708
  %v1451 = vunpack.c.h.b16 %v708
  %v1452 = vunpack.c.l.b16 %v709
  %v1453 = vunpack.c.h.b16 %v709
  %v1454 = vunpack.c.l.b16 %v710
  %v1455 = vunpack.c.h.b16 %v710
  %v1456 = vunpack.c.l.b16 %v711
  %v1457 = vunpack.c.h.b16 %v711
  %v1458 = vunpack.c.l.b16 %v712
  %v1459 = vunpack.c.h.b16 %v712
  %v1460 = vunpack.c.l.b16 %v713
  %v1461 = vunpack.c.h.b16 %v713
  %v1462 = vunpack.c.l.b16 %v714
  %v1463 = vunpack.c.h.b16 %v714
  %v1464 = vunpack.c.l.b16 %v715
  %v1465 = vunpack.c.h.b16 %v715
  %v1466 = vunpack.c.l.b16 %v716
  %v1467 = vunpack.c.h.b16 %v716
  %v1468 = vunpack.c.l.b16 %v717
  %v1469 = vunpack.c.h.b16 %v717
  %v1470 = vunpack.c.l.b16 %v718
  %v1471 = vunpack.c.h.b16 %v718
  %v1472 = vunpack.c.l.b16 %v719
  %v1473 = vunpack.c.h.b16 %v719
  %v1474 = vunpack.c.l.b16 %v720
  %v1475 = vunpack.c.h.b16 %v720
  %v1476 = vunpack.c.l.b16 %v721
  %v1477 = vunpack.c.h.b16 %v721
  %v1478 = vunpack.c.l.b16 %v722
  %v1479 = vunpack.c.h.b16 %v722
  %v1480 = vunpack.c.l.b16 %v723
  %v1481 = vunpack.c.h.b16 %v723
  %v1482 = vunpack.c.l.b16 %v724
  %v1483 = vunpack.c.h.b16 %v724
  %v1484 = vunpack.c.l.b16 %v725
  %v1485 = vunpack.c.h.b16 %v725
  %v1486 = vunpack.c.l.b16 %v726
  %v1487 = vunpack.c.h.b16 %v726
  %v1488 = vunpack.c.l.b16 %v727
  %v1489 = vunpack.c.h.b16 %v727
  %v1490 = vunpack.c.l.b16 %v728
  %v1491 = vunpack.c.h.b16 %v728
  %v1492 = vunpack.c.l.b16 %v729
  %v1493 = vunpack.c.h.b16 %v729
  %v1494 = vunpack.c.l.b16 %v730
  %v1495 = vunpack.c.h.b16 %v730
  %v1496 = vunpack.c.l.b16 %v731
  %v1497 = vunpack.c.h.b16 %v731
  %v1498 = vunpack.c.l.b16 %v732
  %v1499 = vunpack.c.h.b16 %v732
  %v1500 = vunpack.c.l.b16 %v733
  %v1501 = vunpack.c.h.b16 %v733
  %v1502 = vunpack.c.l.b16 %v734
  %v1503 = vunpack.c.h.b16 %v734
  %v1504 = vunpack.c.l.b16 %v735
  %v1505 = vunpack.c.h.b16 %v735
  %v1506 = vunpack.c.l.b16 %v736
  %v1507 = vunpack.c.h.b16 %v736
  %v1508 = vunpack.c.l.b16 %v737
  %v1509 = vunpack.c.h.b16 %v737
  %v1510 = vunpack.c.l.b16 %v738
  %v1511 = vunpack.c.h.b16 %v738
  %v1512 = vunpack.c.l.b16 %v739
  %v1513 = vunpack.c.h.b16 %v739
  %v1514 = vunpack.c.l.b16 %v740
  %v1515 = vunpack.c.h.b16 %v740
  %v1516 = vunpack.c.l.b16 %v741
  %v1517 = vunpack.c.h.b16 %v741
  %v1518 = vunpack.c.l.b16 %v742
  %v1519 = vunpack.c.h.b16 %v742
  %v1520 = vunpack.c.l.b16 %v743
  %v1521 = vunpack.c.h.b16 %v743
  %v1522 = vunpack.c.l.b16 %v744
  %v1523 = vunpack.c.h.b16 %v744
  %v1524 = vunpack.c.l.b16 %v745
  %v1525 = vunpack.c.h.b16 %v745
  %v1526 = vunpack.c.l.b16 %v746
  %v1527 = vunpack.c.h.b16 %v746
  %v1528 = vunpack.c.l.b16 %v747
  %v1529 = vunpack.c.h.b16 %v747
  %v1530 = vunpack.c.l.b16 %v748
  %v1531 = vunpack.c.h.b16 %v748
  %v1532 = vunpack.c.l.b16 %v749
  %v1533 = vunpack.c.h.b16 %v749
  %v1534 = vunpack.c.l.b16 %v750
  %v1535 = vunpack.c.h.b16 %v750
  %v1536 = vunpack.c.l.b16 %v751
  %v1537 = vunpack.c.h.b16 %v751
  %v1538 = vpack.c.b16 %v1034, %v1026
  %v1539 = vpack.c.b16 %v1035, %v1027
  %v1540 = vpack.c.b16 %v1036, %v1028
  %v1541 = vpack.c.b16 %v1037, %v1029
  %v1542 = vpack.c.b16 %v1038, %v1030
  %v1543 = vpack.c.b16 %v1039, %v1031
  %v1544 = vpack.c.b16 %v1040, %v1032
  %v1545 = vpack.c.b16 %v1041, %v1033
  %v1546 = vpack.c.b16 %v1050, %v1042
  %v1547 = vpack.c.b16 %v1051, %v1043
  %v1548 = vpack.c.b16 %v1052, %v1044
  %v1549 = vpack.c.b16 %v1053, %v1045
  %v1550 = vpack.c.b16 %v1054, %v1046
  %v1551 = vpack.c.b16 %v1055, %v1047
  %v1552 = vpack.c.b16 %v1056, %v1048
  %v1553 = vpack.c.b16 %v1057, %v1049
  %v1554 = vpack.c.b16 %v1066, %v1058
  %v1555 = vpack.c.b16 %v1067, %v1059
  %v1556 = vpack.c.b16 %v1068, %v1060
  %v1557 = vpack.c.b16 %v1069, %v1061
  %v1558 = vpack.c.b16 %v1070, %v1062
  %v1559 = vpack.c.b16 %v1071, %v1063
  %v1560 = vpack.c.b16 %v1072, %v1064
  %v1561 = vpack.c.b16 %v1073, %v1065
  %v1562 = vpack.c.b16 %v1082, %v1074
  %v1563 = vpack.c.b16 %v1083, %v1075
  %v1564 = vpack.c.b16 %v1084, %v1076
  %v1565 = vpack.c.b16 %v1085, %v1077
  %v1566 = vpack.c.b16 %v1086, %v1078
  %v1567 = vpack.c.b16 %v1087, %v1079
  %v1568 = vpack.c.b16 %v1088, %v1080
  %v1569 = vpack.c.b16 %v1089, %v1081
  %v1570 = vpack.c.b16 %v1098, %v1090
  %v1571 = vpack.c.b16 %v1099, %v1091
  %v1572 = vpack.c.b16 %v1100, %v1092
  %v1573 = vpack.c.b16 %v1101, %v1093
  %v1574 = vpack.c.b16 %v1102, %v1094
  %v1575 = vpack.c.b16 %v1103, %v1095
  %v1576 = vpack.c.b16 %v1104, %v1096
  %v1577 = vpack.c.b16 %v1105, %v1097
  %v1578 = vpack.c.b16 %v1114, %v1106
  %v1579 = vpack.c.b16 %v1115, %v1107
  %v1580 = vpack.c.b16 %v1116, %v1108
  %v1581 = vpack.c.b16 %v1117, %v1109
  %v1582 = vpack.c.b16 %v1118, %v1110
  %v1583 = vpack.c.b16 %v1119, %v1111
  %v1584 = vpack.c.b16 %v1120, %v1112
  %v1585 = vpack.c.b16 %v1121, %v1113
  %v1586 = vpack.c.b16 %v1130, %v1122
  %v1587 = vpack.c.b16 %v1131, %v1123
  %v1588 = vpack.c.b16 %v1132, %v1124
  %v1589 = vpack.c.b16 %v1133, %v1125
  %v1590 = vpack.c.b16 %v1134, %v1126
  %v1591 = vpack.c.b16 %v1135, %v1127
  %v1592 = vpack.c.b16 %v1136, %v1128
  %v1593 = vpack.c.b16 %v1137, %v1129
  %v1594 = vpack.c.b16 %v1146, %v1138
  %v1595 = vpack.c.b16 %v1147, %v1139
  %v1596 = vpack.c.b16 %v1148, %v1140
  %v1597 = vpack.c.b16 %v1149, %v1141
  %v1598 = vpack.c.b16 %v1150, %v1142
  %v1599 = vpack.c.b16 %v1151, %v1143
  %v1600 = vpack.c.b16 %v1152, %v1144
  %v1601 = vpack.c.b16 %v1153, %v1145
  %v1602 = vpack.c.b16 %v1162, %v1154
  %v1603 = vpack.c.b16 %v1163, %v1155
  %v1604 = vpack.c.b16 %v1164, %v1156
  %v1605 = vpack.c.b16 %v1165, %v1157
  %v1606 = vpack.c.b16 %v1166, %v1158
  %v1607 = vpack.c.b16 %v1167, %v1159
  %v1608 = vpack.c.b16 %v1168, %v1160
  %v1609 = vpack.c.b16 %v1169, %v1161
  %v1610 = vpack.c.b16 %v1178, %v1170
  %v1611 = vpack.c.b16 %v1179, %v1171
  %v1612 = vpack.c.b16 %v1180, %v1172
  %v1613 = vpack.c.b16 %v1181, %v1173
  %v1614 = vpack.c.b16 %v1182, %v1174
  %v1615 = vpack.c.b16 %v1183, %v1175
  %v1616 = vpack.c.b16 %v1184, %v1176
  %v1617 = vpack.c.b16 %v1185, %v1177
  %v1618 = vpack.c.b16 %v1194, %v1186
  %v1619 = vpack.c.b16 %v1195, %v1187
  %v1620 = vpack.c.b16 %v1196, %v1188
  %v1621 = vpack.c.b16 %v1197, %v1189
  %v1622 = vpack.c.b16 %v1198, %v1190
  %v1623 = vpack.c.b16 %v1199, %v1191
  %v1624 = vpack.c.b16 %v1200, %v1192
  %v1625 = vpack.c.b16 %v1201, %v1193
  %v1626 = vpack.c.b16 %v1210, %v1202
  %v1627 = vpack.c.b16 %v1211, %v1203
  %v1628 = vpack.c.b16 %v1212, %v1204
  %v1629 = vpack.c.b16 %v1213, %v1205
  %v1630 = vpack.c.b16 %v1214, %v1206
  %v1631 = vpack.c.b16 %v1215, %v1207
  %v1632 = vpack.c.b16 %v1216, %v1208
  %v1633 = vpack.c.b16 %v1217, %v1209
  %v1634 = vpack.c.b16 %v1226, %v1218
  %v1635 = vpack.c.b16 %v1227, %v1219
  %v1636 = vpack.c.b16 %v1228, %v1220
  %v1637 = vpack.c.b16 %v1229, %v1221
  %v1638 = vpack.c.b16 %v1230, %v1222
  %v1639 = vpack.c.b16 %v1231, %v1223
  %v1640 = vpack.c.b16 %v1232, %v1224
  %v1641 = vpack.c.b16 %v1233, %v1225
  %v1642 = vpack.c.b16 %v1242, %v1234
  %v1643 = vpack.c.b16 %v1243, %v1235
  %v1644 = vpack.c.b16 %v1244, %v1236
  %v1645 = vpack.c.b16 %v1245, %v1237
  %v1646 = vpack.c.b16 %v1246, %v1238
  %v1647 = vpack.c.b16 %v1247, %v1239
  %v1648 = vpack.c.b16 %v1248, %v1240
  %v1649 = vpack.c.b16 %v1249, %v1241
  %v1650 = vpack.c.b16 %v1258, %v1250
  %v1651 = vpack.c.b16 %v1259, %v1251
  %v1652 = vpack.c.b16 %v1260, %v1252
  %v1653 = vpack.c.b16 %v1261, %v1253
  %v1654 = vpack.c.b16 %v1262, %v1254
  %v1655 = vpack.c.b16 %v1263, %v1255
  %v1656 = vpack.c.b16 %v1264, %v1256
  %v1657 = vpack.c.b16 %v1265, %v1257
  %v1658 = vpack.c.b16 %v1274, %v1266
  %v1659 = vpack.c.b16 %v1275, %v1267
  %v1660 = vpack.c.b16 %v1276, %v1268
  %v1661 = vpack.c.b16 %v1277, %v1269
  %v1662 = vpack.c.b16 %v1278, %v1270
  %v1663 = vpack.c.b16 %v1279, %v1271
  %v1664 = vpack.c.b16 %v1280, %v1272
  %v1665 = vpack.c.b16 %v1281, %v1273
  %v1666 = vpack.c.b16 %v1290, %v1282
  %v1667 = vpack.c.b16 %v1291, %v1283
  %v1668 = vpack.c.b16 %v1292, %v1284
  %v1669 = vpack.c.b16 %v1293, %v1285
  %v1670 = vpack.c.b16 %v1294, %v1286
  %v1671 = vpack.c.b16 %v1295, %v1287
  %v1672 = vpack.c.b16 %v1296, %v1288
  %v1673 = vpack.c.b16 %v1297, %v1289
  %v1674 = vpack.c.b16 %v1306, %v1298
  %v1675 = vpack.c.b16 %v1307, %v1299
  %v1676 = vpack.c.b16 %v1308, %v1300
  %v1677 = vpack.c.b16 %v1309, %v1301
  %v1678 = vpack.c.b16 %v1310, %v1302
  %v1679 = vpack.c.b16 %v1311, %v1303
  %v1680 = vpack.c.b16 %v1312, %v1304
  %v1681 = vpack.c.b16 %v1313, %v1305
  %v1682 = vpack.c.b16 %v1322, %v1314
  %v1683 = vpack.c.b16 %v1323, %v1315
  %v1684 = vpack.c.b16 %v1324, %v1316
  %v1685 = vpack.c.b16 %v1325, %v1317
  %v1686 = vpack.c.b16 %v1326, %v1318
  %v1687 = vpack.c.b16 %v1327, %v1319
  %v1688 = vpack.c.b16 %v1328, %v1320
  %v1689 = vpack.c.b16 %v1329, %v1321
  %v1690 = vpack.c.b16 %v1338, %v1330
  %v1691 = vpack.c.b16 %v1339, %v1331
  %v1692 = vpack.c.b16 %v1340, %v1332
  %v1693 = vpack.c.b16 %v1341, %v1333
  %v1694 = vpack.c.b16 %v1342, %v1334
  %v1695 = vpack.c.b16 %v1343, %v1335
  %v1696 = vpack.c.b16 %v1344, %v1336
  %v1697 = vpack.c.b16 %v1345, %v1337
  %v1698 = vpack.c.b16 %v1354, %v1346
  %v1699 = vpack.c.b16 %v1355, %v1347
  %v1700 = vpack.c.b16 %v1356, %v1348
  %v1701 = vpack.c.b16 %v1357, %v1349
  %v1702 = vpack.c.b16 %v1358, %v1350
  %v1703 = vpack.c.b16 %v1359, %v1351
  %v1704 = vpack.c.b16 %v1360, %v1352
  %v1705 = vpack.c.b16 %v1361, %v1353
  %v1706 = vpack.c.b16 %v1370, %v1362
  %v1707 = vpack.c.b16 %v1371, %v1363
  %v1708 = vpack.c.b16 %v1372, %v1364
  %v1709 = vpack.c.b16 %v1373, %v1365
  %v1710 = vpack.c.b16 %v1374, %v1366
  %v1711 = vpack.c.b16 %v1375, %v1367
  %v1712 = vpack.c.b16 %v1376, %v1368
  %v1713 = vpack.c.b16 %v1377, %v1369
  %v1714 = vpack.c.b16 %v1386, %v1378
  %v1715 = vpack.c.b16 %v1387, %v1379
  %v1716 = vpack.c.b16 %v1388, %v1380
  %v1717 = vpack.c.b16 %v1389, %v1381
  %v1718 = vpack.c.b16 %v1390, %v1382
  %v1719 = vpack.c.b16 %v1391, %v1383
  %v1720 = vpack.c.b16 %v1392, %v1384
  %v1721 = vpack.c.b16 %v1393, %v1385
  %v1722 = vpack.c.b16 %v1402, %v1394
  %v1723 = vpack.c.b16 %v1403, %v1395
  %v1724 = vpack.c.b16 %v1404, %v1396
  %v1725 = vpack.c.b16 %v1405, %v1397
  %v1726 = vpack.c.b16 %v1406, %v1398
  %v1727 = vpack.c.b16 %v1407, %v1399
  %v1728 = vpack.c.b16 %v1408, %v1400
  %v1729 = vpack.c.b16 %v1409, %v1401
  %v1730 = vpack.c.b16 %v1418, %v1410
  %v1731 = vpack.c.b16 %v1419, %v1411
  %v1732 = vpack.c.b16 %v1420, %v1412
  %v1733 = vpack.c.b16 %v1421, %v1413
  %v1734 = vpack.c.b16 %v1422, %v1414
  %v1735 = vpack.c.b16 %v1423, %v1415
  %v1736 = vpack.c.b16 %v1424, %v1416
  %v1737 = vpack.c.b16 %v1425, %v1417
  %v1738 = vpack.c.b16 %v1434, %v1426
  %v1739 = vpack.c.b16 %v1435, %v1427
  %v1740 = vpack.c.b16 %v1436, %v1428
  %v1741 = vpack.c.b16 %v1437, %v1429
  %v1742 = vpack.c.b16 %v1438, %v1430
  %v1743 = vpack.c.b16 %v1439, %v1431
  %v1744 = vpack.c.b16 %v1440, %v1432
  %v1745 = vpack.c.b16 %v1441, %v1433
  %v1746 = vpack.c.b16 %v1450, %v1442
  %v1747 = vpack.c.b16 %v1451, %v1443
  %v1748 = vpack.c.b16 %v1452, %v1444
  %v1749 = vpack.c.b16 %v1453, %v1445
  %v1750 = vpack.c.b16 %v1454, %v1446
  %v1751 = vpack.c.b16 %v1455, %v1447
  %v1752 = vpack.c.b16 %v1456, %v1448
  %v1753 = vpack.c.b16 %v1457, %v1449
  %v1754 = vpack.c.b16 %v1466, %v1458
  %v1755 = vpack.c.b16 %v1467, %v1459
  %v1756 = vpack.c.b16 %v1468, %v1460
  %v1757 = vpack.c.b16 %v1469, %v1461
  %v1758 = vpack.c.b16 %v1470, %v1462
  %v1759 = vpack.c.b16 %v1471, %v1463
  %v1760 = vpack.c.b16 %v1472, %v1464
  %v1761 = vpack.c.b16 %v1473, %v1465
  %v1762 = vpack.c.b16 %v1482, %v1474
  %v1763 = vpack.c.b16 %v1483, %v1475
  %v1764 = vpack.c.b16 %v1484, %v1476
  %v1765 = vpack.c.b16 %v1485, %v1477
  %v1766 = vpack.c.b16 %v1486, %v1478
  %v1767 = vpack.c.b16 %v1487, %v1479
  %v1768 = vpack.c.b16 %v1488, %v1480
  %v1769 = vpack.c.b16 %v1489, %v1481
  %v1770 = vpack.c.b16 %v1498, %v1490
  %v1771 = vpack.c.b16 %v1499, %v1491
  %v1772 = vpack.c.b16 %v1500, %v1492
  %v1773 = vpack.c.b16 %v1501, %v1493
  %v1774 = vpack.c.b16 %v1502, %v1494
  %v1775 = vpack.c.b16 %v1503, %v1495
  %v1776 = vpack.c.b16 %v1504, %v1496
  %v1777 = vpack.c.b16 %v1505, %v1497
  %v1778 = vpack.c.b16 %v1514, %v1506
  %v1779 = vpack.c.b16 %v1515, %v1507
  %v1780 = vpack.c.b16 %v1516, %v1508
  %v1781 = vpack.c.b16 %v1517, %v1509
  %v1782 = vpack.c.b16 %v1518, %v1510
  %v1783 = vpack.c.b16 %v1519, %v1511
  %v1784 = vpack.c.b16 %v1520, %v1512
  %v1785 = vpack.c.b16 %v1521, %v1513
  %v1786 = vpack.c.b16 %v1530, %v1522
  %v1787 = vpack.c.b16 %v1531, %v1523
  %v1788 = vpack.c.b16 %v1532, %v1524
  %v1789 = vpack.c.b16 %v1533, %v1525
  %v1790 = vpack.c.b16 %v1534, %v1526
  %v1791 = vpack.c.b16 %v1535, %v1527
  %v1792 = vpack.c.b16 %v1536, %v1528
  %v1793 = vpack.c.b16 %v1537, %v1529
  %2050 = vmatpush.bf16.msra.mxu0 %v1594
  %2051 = vmatpush.bf16.msra.mxu0 %v1586
  %2052 = vmatpush.bf16.msra.mxu0 %v1578
  %2053 = vmatpush.bf16.msra.mxu0 %v1570
  %2054 = vmatpush.bf16.msra.mxu0 %v1562
  %2055 = vmatpush.bf16.msra.mxu0 %v1554
  %2056 = vmatpush.bf16.msra.mxu0 %v1546
  %2057 = vmatpush.bf16.msra.mxu0 %v1538
  %2058 = vmatmul.bf16.gmra.mxu0 %v492
  %v2059 = vpop.f32.mrf.mxu0
  %v2060 = vadd.f32 %v754, %v2059
  %v2061 = vpop.f32.mrf.mxu0
  %2062 = vdwg.mxu0
  %2063 = vmatpush.bf16.msra.mxu0 %v1658
  %2064 = vmatpush.bf16.msra.mxu0 %v1650
  %2065 = vmatpush.bf16.msra.mxu0 %v1642
  %2066 = vmatpush.bf16.msra.mxu0 %v1634
  %2067 = vmatpush.bf16.msra.mxu0 %v1626
  %2068 = vmatpush.bf16.msra.mxu0 %v1618
  %2069 = vmatpush.bf16.msra.mxu0 %v1610
  %2070 = vmatpush.bf16.msra.mxu0 %v1602
  %2071 = vmatmul.bf16.gmra.mxu0 %v493
  %v2072 = vpop.f32.mrf.mxu0
  %v2073 = vadd.f32 %v2060, %v2072
  %v2074 = vpop.f32.mrf.mxu0
  %2075 = vdwg.mxu0
  %2076 = vmatpush.bf16.msra.mxu0 %v1722
  %2077 = vmatpush.bf16.msra.mxu0 %v1714
  %2078 = vmatpush.bf16.msra.mxu0 %v1706
  %2079 = vmatpush.bf16.msra.mxu0 %v1698
  %2080 = vmatpush.bf16.msra.mxu0 %v1690
  %2081 = vmatpush.bf16.msra.mxu0 %v1682
  %2082 = vmatpush.bf16.msra.mxu0 %v1674
  %2083 = vmatpush.bf16.msra.mxu0 %v1666
  %2084 = vmatmul.bf16.gmra.mxu0 %v494
  %v2085 = vpop.f32.mrf.mxu0
  %v2086 = vadd.f32 %v2073, %v2085
  %v2087 = vpop.f32.mrf.mxu0
  %2088 = vdwg.mxu0
  %2089 = vmatpush.bf16.msra.mxu0 %v1786
  %2090 = vmatpush.bf16.msra.mxu0 %v1778
  %2091 = vmatpush.bf16.msra.mxu0 %v1770
  %2092 = vmatpush.bf16.msra.mxu0 %v1762
  %2093 = vmatpush.bf16.msra.mxu0 %v1754
  %2094 = vmatpush.bf16.msra.mxu0 %v1746
  %2095 = vmatpush.bf16.msra.mxu0 %v1738
  %2096 = vmatpush.bf16.msra.mxu0 %v1730
  %2097 = vmatmul.bf16.gmra.mxu0 %v495
  %v2098 = vpop.f32.mrf.mxu0
  %v2099 = vadd.f32 %v2086, %v2098
  %v2100 = vpop.f32.mrf.mxu0
  %2101 = vdwg.mxu0
  %2102 = vmatpush.bf16.msra.mxu0 %v1595
  %2103 = vmatpush.bf16.msra.mxu0 %v1587
  %2104 = vmatpush.bf16.msra.mxu0 %v1579
  %2105 = vmatpush.bf16.msra.mxu0 %v1571
  %2106 = vmatpush.bf16.msra.mxu0 %v1563
  %2107 = vmatpush.bf16.msra.mxu0 %v1555
  %2108 = vmatpush.bf16.msra.mxu0 %v1547
  %2109 = vmatpush.bf16.msra.mxu0 %v1539
  %2110 = vmatmul.bf16.gmra.mxu0 %v492
  %v2111 = vpop.f32.mrf.mxu0
  %v2112 = vadd.f32 %v755, %v2111
  %v2113 = vpop.f32.mrf.mxu0
  %2114 = vdwg.mxu0
  %2115 = vmatpush.bf16.msra.mxu0 %v1659
  %2116 = vmatpush.bf16.msra.mxu0 %v1651
  %2117 = vmatpush.bf16.msra.mxu0 %v1643
  %2118 = vmatpush.bf16.msra.mxu0 %v1635
  %2119 = vmatpush.bf16.msra.mxu0 %v1627
  %2120 = vmatpush.bf16.msra.mxu0 %v1619
  %2121 = vmatpush.bf16.msra.mxu0 %v1611
  %2122 = vmatpush.bf16.msra.mxu0 %v1603
  %2123 = vmatmul.bf16.gmra.mxu0 %v493
  %v2124 = vpop.f32.mrf.mxu0
  %v2125 = vadd.f32 %v2112, %v2124
  %v2126 = vpop.f32.mrf.mxu0
  %2127 = vdwg.mxu0
  %2128 = vmatpush.bf16.msra.mxu0 %v1723
  %2129 = vmatpush.bf16.msra.mxu0 %v1715
  %2130 = vmatpush.bf16.msra.mxu0 %v1707
  %2131 = vmatpush.bf16.msra.mxu0 %v1699
  %2132 = vmatpush.bf16.msra.mxu0 %v1691
  %2133 = vmatpush.bf16.msra.mxu0 %v1683
  %2134 = vmatpush.bf16.msra.mxu0 %v1675
  %2135 = vmatpush.bf16.msra.mxu0 %v1667
  %2136 = vmatmul.bf16.gmra.mxu0 %v494
  %v2137 = vpop.f32.mrf.mxu0
  %v2138 = vadd.f32 %v2125, %v2137
  %v2139 = vpop.f32.mrf.mxu0
  %2140 = vdwg.mxu0
  %2141 = vmatpush.bf16.msra.mxu0 %v1787
  %2142 = vmatpush.bf16.msra.mxu0 %v1779
  %2143 = vmatpush.bf16.msra.mxu0 %v1771
  %2144 = vmatpush.bf16.msra.mxu0 %v1763
  %2145 = vmatpush.bf16.msra.mxu0 %v1755
  %2146 = vmatpush.bf16.msra.mxu0 %v1747
  %2147 = vmatpush.bf16.msra.mxu0 %v1739
  %2148 = vmatpush.bf16.msra.mxu0 %v1731
  %2149 = vmatmul.bf16.gmra.mxu0 %v495
  %v2150 = vpop.f32.mrf.mxu0
  %v2151 = vadd.f32 %v2138, %v2150
  %v2152 = vpop.f32.mrf.mxu0
  %2153 = vdwg.mxu0
  %2154 = vmatpush.bf16.msra.mxu0 %v1596
  %2155 = vmatpush.bf16.msra.mxu0 %v1588
  %2156 = vmatpush.bf16.msra.mxu0 %v1580
  %2157 = vmatpush.bf16.msra.mxu0 %v1572
  %2158 = vmatpush.bf16.msra.mxu0 %v1564
  %2159 = vmatpush.bf16.msra.mxu0 %v1556
  %2160 = vmatpush.bf16.msra.mxu0 %v1548
  %2161 = vmatpush.bf16.msra.mxu0 %v1540
  %2162 = vmatmul.bf16.gmra.mxu0 %v492
  %v2163 = vpop.f32.mrf.mxu0
  %v2164 = vadd.f32 %v756, %v2163
  %v2165 = vpop.f32.mrf.mxu0
  %2166 = vdwg.mxu0
  %2167 = vmatpush.bf16.msra.mxu0 %v1660
  %2168 = vmatpush.bf16.msra.mxu0 %v1652
  %2169 = vmatpush.bf16.msra.mxu0 %v1644
  %2170 = vmatpush.bf16.msra.mxu0 %v1636
  %2171 = vmatpush.bf16.msra.mxu0 %v1628
  %2172 = vmatpush.bf16.msra.mxu0 %v1620
  %2173 = vmatpush.bf16.msra.mxu0 %v1612
  %2174 = vmatpush.bf16.msra.mxu0 %v1604
  %2175 = vmatmul.bf16.gmra.mxu0 %v493
  %v2176 = vpop.f32.mrf.mxu0
  %v2177 = vadd.f32 %v2164, %v2176
  %v2178 = vpop.f32.mrf.mxu0
  %2179 = vdwg.mxu0
  %2180 = vmatpush.bf16.msra.mxu0 %v1724
  %2181 = vmatpush.bf16.msra.mxu0 %v1716
  %2182 = vmatpush.bf16.msra.mxu0 %v1708
  %2183 = vmatpush.bf16.msra.mxu0 %v1700
  %2184 = vmatpush.bf16.msra.mxu0 %v1692
  %2185 = vmatpush.bf16.msra.mxu0 %v1684
  %2186 = vmatpush.bf16.msra.mxu0 %v1676
  %2187 = vmatpush.bf16.msra.mxu0 %v1668
  %2188 = vmatmul.bf16.gmra.mxu0 %v494
  %v2189 = vpop.f32.mrf.mxu0
  %v2190 = vadd.f32 %v2177, %v2189
  %v2191 = vpop.f32.mrf.mxu0
  %2192 = vdwg.mxu0
  %2193 = vmatpush.bf16.msra.mxu0 %v1788
  %2194 = vmatpush.bf16.msra.mxu0 %v1780
  %2195 = vmatpush.bf16.msra.mxu0 %v1772
  %2196 = vmatpush.bf16.msra.mxu0 %v1764
  %2197 = vmatpush.bf16.msra.mxu0 %v1756
  %2198 = vmatpush.bf16.msra.mxu0 %v1748
  %2199 = vmatpush.bf16.msra.mxu0 %v1740
  %2200 = vmatpush.bf16.msra.mxu0 %v1732
  %2201 = vmatmul.bf16.gmra.mxu0 %v495
  %v2202 = vpop.f32.mrf.mxu0
  %v2203 = vadd.f32 %v2190, %v2202
  %v2204 = vpop.f32.mrf.mxu0
  %2205 = vdwg.mxu0
  %2206 = vmatpush.bf16.msra.mxu0 %v1597
  %2207 = vmatpush.bf16.msra.mxu0 %v1589
  %2208 = vmatpush.bf16.msra.mxu0 %v1581
  %2209 = vmatpush.bf16.msra.mxu0 %v1573
  %2210 = vmatpush.bf16.msra.mxu0 %v1565
  %2211 = vmatpush.bf16.msra.mxu0 %v1557
  %2212 = vmatpush.bf16.msra.mxu0 %v1549
  %2213 = vmatpush.bf16.msra.mxu0 %v1541
  %2214 = vmatmul.bf16.gmra.mxu0 %v492
  %v2215 = vpop.f32.mrf.mxu0
  %v2216 = vadd.f32 %v757, %v2215
  %v2217 = vpop.f32.mrf.mxu0
  %2218 = vdwg.mxu0
  %2219 = vmatpush.bf16.msra.mxu0 %v1661
  %2220 = vmatpush.bf16.msra.mxu0 %v1653
  %2221 = vmatpush.bf16.msra.mxu0 %v1645
  %2222 = vmatpush.bf16.msra.mxu0 %v1637
  %2223 = vmatpush.bf16.msra.mxu0 %v1629
  %2224 = vmatpush.bf16.msra.mxu0 %v1621
  %2225 = vmatpush.bf16.msra.mxu0 %v1613
  %2226 = vmatpush.bf16.msra.mxu0 %v1605
  %2227 = vmatmul.bf16.gmra.mxu0 %v493
  %v2228 = vpop.f32.mrf.mxu0
  %v2229 = vadd.f32 %v2216, %v2228
  %v2230 = vpop.f32.mrf.mxu0
  %2231 = vdwg.mxu0
  %2232 = vmatpush.bf16.msra.mxu0 %v1725
  %2233 = vmatpush.bf16.msra.mxu0 %v1717
  %2234 = vmatpush.bf16.msra.mxu0 %v1709
  %2235 = vmatpush.bf16.msra.mxu0 %v1701
  %2236 = vmatpush.bf16.msra.mxu0 %v1693
  %2237 = vmatpush.bf16.msra.mxu0 %v1685
  %2238 = vmatpush.bf16.msra.mxu0 %v1677
  %2239 = vmatpush.bf16.msra.mxu0 %v1669
  %2240 = vmatmul.bf16.gmra.mxu0 %v494
  %v2241 = vpop.f32.mrf.mxu0
  %v2242 = vadd.f32 %v2229, %v2241
  %v2243 = vpop.f32.mrf.mxu0
  %2244 = vdwg.mxu0
  %2245 = vmatpush.bf16.msra.mxu0 %v1789
  %2246 = vmatpush.bf16.msra.mxu0 %v1781
  %2247 = vmatpush.bf16.msra.mxu0 %v1773
  %2248 = vmatpush.bf16.msra.mxu0 %v1765
  %2249 = vmatpush.bf16.msra.mxu0 %v1757
  %2250 = vmatpush.bf16.msra.mxu0 %v1749
  %2251 = vmatpush.bf16.msra.mxu0 %v1741
  %2252 = vmatpush.bf16.msra.mxu0 %v1733
  %2253 = vmatmul.bf16.gmra.mxu0 %v495
  %v2254 = vpop.f32.mrf.mxu0
  %v2255 = vadd.f32 %v2242, %v2254
  %v2256 = vpop.f32.mrf.mxu0
  %2257 = vdwg.mxu0
  %2258 = vmatpush.bf16.msra.mxu0 %v1598
  %2259 = vmatpush.bf16.msra.mxu0 %v1590
  %2260 = vmatpush.bf16.msra.mxu0 %v1582
  %2261 = vmatpush.bf16.msra.mxu0 %v1574
  %2262 = vmatpush.bf16.msra.mxu0 %v1566
  %2263 = vmatpush.bf16.msra.mxu0 %v1558
  %2264 = vmatpush.bf16.msra.mxu0 %v1550
  %2265 = vmatpush.bf16.msra.mxu0 %v1542
  %2266 = vmatmul.bf16.gmra.mxu0 %v492
  %v2267 = vpop.f32.mrf.mxu0
  %v2268 = vadd.f32 %v758, %v2267
  %v2269 = vpop.f32.mrf.mxu0
  %2270 = vdwg.mxu0
  %2271 = vmatpush.bf16.msra.mxu0 %v1662
  %2272 = vmatpush.bf16.msra.mxu0 %v1654
  %2273 = vmatpush.bf16.msra.mxu0 %v1646
  %2274 = vmatpush.bf16.msra.mxu0 %v1638
  %2275 = vmatpush.bf16.msra.mxu0 %v1630
  %2276 = vmatpush.bf16.msra.mxu0 %v1622
  %2277 = vmatpush.bf16.msra.mxu0 %v1614
  %2278 = vmatpush.bf16.msra.mxu0 %v1606
  %2279 = vmatmul.bf16.gmra.mxu0 %v493
  %v2280 = vpop.f32.mrf.mxu0
  %v2281 = vadd.f32 %v2268, %v2280
  %v2282 = vpop.f32.mrf.mxu0
  %2283 = vdwg.mxu0
  %2284 = vmatpush.bf16.msra.mxu0 %v1726
  %2285 = vmatpush.bf16.msra.mxu0 %v1718
  %2286 = vmatpush.bf16.msra.mxu0 %v1710
  %2287 = vmatpush.bf16.msra.mxu0 %v1702
  %2288 = vmatpush.bf16.msra.mxu0 %v1694
  %2289 = vmatpush.bf16.msra.mxu0 %v1686
  %2290 = vmatpush.bf16.msra.mxu0 %v1678
  %2291 = vmatpush.bf16.msra.mxu0 %v1670
  %2292 = vmatmul.bf16.gmra.mxu0 %v494
  %v2293 = vpop.f32.mrf.mxu0
  %v2294 = vadd.f32 %v2281, %v2293
  %v2295 = vpop.f32.mrf.mxu0
  %2296 = vdwg.mxu0
  %2297 = vmatpush.bf16.msra.mxu0 %v1790
  %2298 = vmatpush.bf16.msra.mxu0 %v1782
  %2299 = vmatpush.bf16.msra.mxu0 %v1774
  %2300 = vmatpush.bf16.msra.mxu0 %v1766
  %2301 = vmatpush.bf16.msra.mxu0 %v1758
  %2302 = vmatpush.bf16.msra.mxu0 %v1750
  %2303 = vmatpush.bf16.msra.mxu0 %v1742
  %2304 = vmatpush.bf16.msra.mxu0 %v1734
  %2305 = vmatmul.bf16.gmra.mxu0 %v495
  %v2306 = vpop.f32.mrf.mxu0
  %v2307 = vadd.f32 %v2294, %v2306
  %v2308 = vpop.f32.mrf.mxu0
  %2309 = vdwg.mxu0
  %2310 = vmatpush.bf16.msra.mxu0 %v1599
  %2311 = vmatpush.bf16.msra.mxu0 %v1591
  %2312 = vmatpush.bf16.msra.mxu0 %v1583
  %2313 = vmatpush.bf16.msra.mxu0 %v1575
  %2314 = vmatpush.bf16.msra.mxu0 %v1567
  %2315 = vmatpush.bf16.msra.mxu0 %v1559
  %2316 = vmatpush.bf16.msra.mxu0 %v1551
  %2317 = vmatpush.bf16.msra.mxu0 %v1543
  %2318 = vmatmul.bf16.gmra.mxu0 %v492
  %v2319 = vpop.f32.mrf.mxu0
  %v2320 = vadd.f32 %v759, %v2319
  %v2321 = vpop.f32.mrf.mxu0
  %2322 = vdwg.mxu0
  %2323 = vmatpush.bf16.msra.mxu0 %v1663
  %2324 = vmatpush.bf16.msra.mxu0 %v1655
  %2325 = vmatpush.bf16.msra.mxu0 %v1647
  %2326 = vmatpush.bf16.msra.mxu0 %v1639
  %2327 = vmatpush.bf16.msra.mxu0 %v1631
  %2328 = vmatpush.bf16.msra.mxu0 %v1623
  %2329 = vmatpush.bf16.msra.mxu0 %v1615
  %2330 = vmatpush.bf16.msra.mxu0 %v1607
  %2331 = vmatmul.bf16.gmra.mxu0 %v493
  %v2332 = vpop.f32.mrf.mxu0
  %v2333 = vadd.f32 %v2320, %v2332
  %v2334 = vpop.f32.mrf.mxu0
  %2335 = vdwg.mxu0
  %2336 = vmatpush.bf16.msra.mxu0 %v1727
  %2337 = vmatpush.bf16.msra.mxu0 %v1719
  %2338 = vmatpush.bf16.msra.mxu0 %v1711
  %2339 = vmatpush.bf16.msra.mxu0 %v1703
  %2340 = vmatpush.bf16.msra.mxu0 %v1695
  %2341 = vmatpush.bf16.msra.mxu0 %v1687
  %2342 = vmatpush.bf16.msra.mxu0 %v1679
  %2343 = vmatpush.bf16.msra.mxu0 %v1671
  %2344 = vmatmul.bf16.gmra.mxu0 %v494
  %v2345 = vpop.f32.mrf.mxu0
  %v2346 = vadd.f32 %v2333, %v2345
  %v2347 = vpop.f32.mrf.mxu0
  %2348 = vdwg.mxu0
  %2349 = vmatpush.bf16.msra.mxu0 %v1791
  %2350 = vmatpush.bf16.msra.mxu0 %v1783
  %2351 = vmatpush.bf16.msra.mxu0 %v1775
  %2352 = vmatpush.bf16.msra.mxu0 %v1767
  %2353 = vmatpush.bf16.msra.mxu0 %v1759
  %2354 = vmatpush.bf16.msra.mxu0 %v1751
  %2355 = vmatpush.bf16.msra.mxu0 %v1743
  %2356 = vmatpush.bf16.msra.mxu0 %v1735
  %2357 = vmatmul.bf16.gmra.mxu0 %v495
  %v2358 = vpop.f32.mrf.mxu0
  %v2359 = vadd.f32 %v2346, %v2358
  %v2360 = vpop.f32.mrf.mxu0
  %2361 = vdwg.mxu0
  %2362 = vmatpush.bf16.msra.mxu0 %v1600
  %2363 = vmatpush.bf16.msra.mxu0 %v1592
  %2364 = vmatpush.bf16.msra.mxu0 %v1584
  %2365 = vmatpush.bf16.msra.mxu0 %v1576
  %2366 = vmatpush.bf16.msra.mxu0 %v1568
  %2367 = vmatpush.bf16.msra.mxu0 %v1560
  %2368 = vmatpush.bf16.msra.mxu0 %v1552
  %2369 = vmatpush.bf16.msra.mxu0 %v1544
  %2370 = vmatmul.bf16.gmra.mxu0 %v492
  %v2371 = vpop.f32.mrf.mxu0
  %v2372 = vadd.f32 %v760, %v2371
  %v2373 = vpop.f32.mrf.mxu0
  %2374 = vdwg.mxu0
  %2375 = vmatpush.bf16.msra.mxu0 %v1664
  %2376 = vmatpush.bf16.msra.mxu0 %v1656
  %2377 = vmatpush.bf16.msra.mxu0 %v1648
  %2378 = vmatpush.bf16.msra.mxu0 %v1640
  %2379 = vmatpush.bf16.msra.mxu0 %v1632
  %2380 = vmatpush.bf16.msra.mxu0 %v1624
  %2381 = vmatpush.bf16.msra.mxu0 %v1616
  %2382 = vmatpush.bf16.msra.mxu0 %v1608
  %2383 = vmatmul.bf16.gmra.mxu0 %v493
  %v2384 = vpop.f32.mrf.mxu0
  %v2385 = vadd.f32 %v2372, %v2384
  %v2386 = vpop.f32.mrf.mxu0
  %2387 = vdwg.mxu0
  %2388 = vmatpush.bf16.msra.mxu0 %v1728
  %2389 = vmatpush.bf16.msra.mxu0 %v1720
  %2390 = vmatpush.bf16.msra.mxu0 %v1712
  %2391 = vmatpush.bf16.msra.mxu0 %v1704
  %2392 = vmatpush.bf16.msra.mxu0 %v1696
  %2393 = vmatpush.bf16.msra.mxu0 %v1688
  %2394 = vmatpush.bf16.msra.mxu0 %v1680
  %2395 = vmatpush.bf16.msra.mxu0 %v1672
  %2396 = vmatmul.bf16.gmra.mxu0 %v494
  %v2397 = vpop.f32.mrf.mxu0
  %v2398 = vadd.f32 %v2385, %v2397
  %v2399 = vpop.f32.mrf.mxu0
  %2400 = vdwg.mxu0
  %2401 = vmatpush.bf16.msra.mxu0 %v1792
  %2402 = vmatpush.bf16.msra.mxu0 %v1784
  %2403 = vmatpush.bf16.msra.mxu0 %v1776
  %2404 = vmatpush.bf16.msra.mxu0 %v1768
  %2405 = vmatpush.bf16.msra.mxu0 %v1760
  %2406 = vmatpush.bf16.msra.mxu0 %v1752
  %2407 = vmatpush.bf16.msra.mxu0 %v1744
  %2408 = vmatpush.bf16.msra.mxu0 %v1736
  %2409 = vmatmul.bf16.gmra.mxu0 %v495
  %v2410 = vpop.f32.mrf.mxu0
  %v2411 = vadd.f32 %v2398, %v2410
  %v2412 = vpop.f32.mrf.mxu0
  %2413 = vdwg.mxu0
  %2414 = vmatpush.bf16.msra.mxu0 %v1601
  %2415 = vmatpush.bf16.msra.mxu0 %v1593
  %2416 = vmatpush.bf16.msra.mxu0 %v1585
  %2417 = vmatpush.bf16.msra.mxu0 %v1577
  %2418 = vmatpush.bf16.msra.mxu0 %v1569
  %2419 = vmatpush.bf16.msra.mxu0 %v1561
  %2420 = vmatpush.bf16.msra.mxu0 %v1553
  %2421 = vmatpush.bf16.msra.mxu0 %v1545
  %2422 = vmatmul.bf16.gmra.mxu0 %v492
  %v2423 = vpop.f32.mrf.mxu0
  %v2424 = vadd.f32 %v761, %v2423
  %v2425 = vpop.f32.mrf.mxu0
  %2426 = vdwg.mxu0
  %2427 = vmatpush.bf16.msra.mxu0 %v1665
  %2428 = vmatpush.bf16.msra.mxu0 %v1657
  %2429 = vmatpush.bf16.msra.mxu0 %v1649
  %2430 = vmatpush.bf16.msra.mxu0 %v1641
  %2431 = vmatpush.bf16.msra.mxu0 %v1633
  %2432 = vmatpush.bf16.msra.mxu0 %v1625
  %2433 = vmatpush.bf16.msra.mxu0 %v1617
  %2434 = vmatpush.bf16.msra.mxu0 %v1609
  %2435 = vmatmul.bf16.gmra.mxu0 %v493
  %v2436 = vpop.f32.mrf.mxu0
  %v2437 = vadd.f32 %v2424, %v2436
  %v2438 = vpop.f32.mrf.mxu0
  %2439 = vdwg.mxu0
  %2440 = vmatpush.bf16.msra.mxu0 %v1729
  %2441 = vmatpush.bf16.msra.mxu0 %v1721
  %2442 = vmatpush.bf16.msra.mxu0 %v1713
  %2443 = vmatpush.bf16.msra.mxu0 %v1705
  %2444 = vmatpush.bf16.msra.mxu0 %v1697
  %2445 = vmatpush.bf16.msra.mxu0 %v1689
  %2446 = vmatpush.bf16.msra.mxu0 %v1681
  %2447 = vmatpush.bf16.msra.mxu0 %v1673
  %2448 = vmatmul.bf16.gmra.mxu0 %v494
  %v2449 = vpop.f32.mrf.mxu0
  %v2450 = vadd.f32 %v2437, %v2449
  %v2451 = vpop.f32.mrf.mxu0
  %2452 = vdwg.mxu0
  %2453 = vmatpush.bf16.msra.mxu0 %v1793
  %2454 = vmatpush.bf16.msra.mxu0 %v1785
  %2455 = vmatpush.bf16.msra.mxu0 %v1777
  %2456 = vmatpush.bf16.msra.mxu0 %v1769
  %2457 = vmatpush.bf16.msra.mxu0 %v1761
  %2458 = vmatpush.bf16.msra.mxu0 %v1753
  %2459 = vmatpush.bf16.msra.mxu0 %v1745
  %2460 = vmatpush.bf16.msra.mxu0 %v1737
  %2461 = vmatmul.bf16.gmra.mxu0 %v495
  %v2462 = vpop.f32.mrf.mxu0
  %v2463 = vadd.f32 %v2450, %v2462
  %v2464 = vpop.f32.mrf.mxu0
  %2465 = vdwg.mxu0
  %v2466 = vmax.f32 %v2099, 0.0
  %v2467 = vmax.f32 %v2151, 0.0
  %v2468 = vmax.f32 %v2203, 0.0
  %v2469 = vmax.f32 %v2255, 0.0
  %v2470 = vmax.f32 %v2307, 0.0
  %v2471 = vmax.f32 %v2359, 0.0
  %v2472 = vmax.f32 %v2411, 0.0
  %v2473 = vmax.f32 %v2463, 0.0
  %v2474 = vld [vmem:[%s6] sm:$0xff]
  %v2475 = vld [vmem:[%s6 + $0x8] sm:$0xff]
  %v2476 = vld [vmem:[%s6 + $0x10] sm:$0xff]
  %v2477 = vld [vmem:[%s6 + $0x18] sm:$0xff]
  %v2478 = vld [vmem:[%s6 + $0x20] sm:$0xff]
  %v2479 = vld [vmem:[%s6 + $0x28] sm:$0xff]
  %v2480 = vld [vmem:[%s6 + $0x30] sm:$0xff]
  %v2481 = vld [vmem:[%s6 + $0x38] sm:$0xff]
  %v2482 = vld [vmem:[%s6 + $0x40] sm:$0xff]
  %v2483 = vld [vmem:[%s6 + $0x48] sm:$0xff]
  %v2484 = vld [vmem:[%s6 + $0x50] sm:$0xff]
  %v2485 = vld [vmem:[%s6 + $0x58] sm:$0xff]
  %v2486 = vld [vmem:[%s6 + $0x60] sm:$0xff]
  %v2487 = vld [vmem:[%s6 + $0x68] sm:$0xff]
  %v2488 = vld [vmem:[%s6 + $0x70] sm:$0xff]
  %v2489 = vld [vmem:[%s6 + $0x78] sm:$0xff]
  %v2490 = vld [vmem:[%s6 + $0x80] sm:$0xff]
  %v2491 = vld [vmem:[%s6 + $0x88] sm:$0xff]
  %v2492 = vld [vmem:[%s6 + $0x90] sm:$0xff]
  %v2493 = vld [vmem:[%s6 + $0x98] sm:$0xff]
  %v2494 = vld [vmem:[%s6 + $0xa0] sm:$0xff]
  %v2495 = vld [vmem:[%s6 + $0xa8] sm:$0xff]
  %v2496 = vld [vmem:[%s6 + $0xb0] sm:$0xff]
  %v2497 = vld [vmem:[%s6 + $0xb8] sm:$0xff]
  %v2498 = vld [vmem:[%s6 + $0xc0] sm:$0xff]
  %v2499 = vld [vmem:[%s6 + $0xc8] sm:$0xff]
  %v2500 = vld [vmem:[%s6 + $0xd0] sm:$0xff]
  %v2501 = vld [vmem:[%s6 + $0xd8] sm:$0xff]
  %v2502 = vld [vmem:[%s6 + $0xe0] sm:$0xff]
  %v2503 = vld [vmem:[%s6 + $0xe8] sm:$0xff]
  %v2504 = vld [vmem:[%s6 + $0xf0] sm:$0xff]
  %v2505 = vld [vmem:[%s6 + $0xf8] sm:$0xff]
  %v2506 = vld [vmem:[%s6 + $0x100] sm:$0xff]
  %v2507 = vld [vmem:[%s6 + $0x108] sm:$0xff]
  %v2508 = vld [vmem:[%s6 + $0x110] sm:$0xff]
  %v2509 = vld [vmem:[%s6 + $0x118] sm:$0xff]
  %v2510 = vld [vmem:[%s6 + $0x120] sm:$0xff]
  %v2511 = vld [vmem:[%s6 + $0x128] sm:$0xff]
  %v2512 = vld [vmem:[%s6 + $0x130] sm:$0xff]
  %v2513 = vld [vmem:[%s6 + $0x138] sm:$0xff]
  %v2514 = vld [vmem:[%s6 + $0x140] sm:$0xff]
  %v2515 = vld [vmem:[%s6 + $0x148] sm:$0xff]
  %v2516 = vld [vmem:[%s6 + $0x150] sm:$0xff]
  %v2517 = vld [vmem:[%s6 + $0x158] sm:$0xff]
  %v2518 = vld [vmem:[%s6 + $0x160] sm:$0xff]
  %v2519 = vld [vmem:[%s6 + $0x168] sm:$0xff]
  %v2520 = vld [vmem:[%s6 + $0x170] sm:$0xff]
  %v2521 = vld [vmem:[%s6 + $0x178] sm:$0xff]
  %v2522 = vld [vmem:[%s6 + $0x180] sm:$0xff]
  %v2523 = vld [vmem:[%s6 + $0x188] sm:$0xff]
  %v2524 = vld [vmem:[%s6 + $0x190] sm:$0xff]
  %v2525 = vld [vmem:[%s6 + $0x198] sm:$0xff]
  %v2526 = vld [vmem:[%s6 + $0x1a0] sm:$0xff]
  %v2527 = vld [vmem:[%s6 + $0x1a8] sm:$0xff]
  %v2528 = vld [vmem:[%s6 + $0x1b0] sm:$0xff]
  %v2529 = vld [vmem:[%s6 + $0x1b8] sm:$0xff]
  %v2530 = vld [vmem:[%s6 + $0x1c0] sm:$0xff]
  %v2531 = vld [vmem:[%s6 + $0x1c8] sm:$0xff]
  %v2532 = vld [vmem:[%s6 + $0x1d0] sm:$0xff]
  %v2533 = vld [vmem:[%s6 + $0x1d8] sm:$0xff]
  %v2534 = vld [vmem:[%s6 + $0x1e0] sm:$0xff]
  %v2535 = vld [vmem:[%s6 + $0x1e8] sm:$0xff]
  %v2536 = vld [vmem:[%s6 + $0x1f0] sm:$0xff]
  %v2537 = vld [vmem:[%s6 + $0x1f8] sm:$0xff]
  %v2538 = vld [vmem:[%s6 + $0x200] sm:$0xff]
  %v2539 = vld [vmem:[%s6 + $0x208] sm:$0xff]
  %v2540 = vld [vmem:[%s6 + $0x210] sm:$0xff]
  %v2541 = vld [vmem:[%s6 + $0x218] sm:$0xff]
  %v2542 = vld [vmem:[%s6 + $0x220] sm:$0xff]
  %v2543 = vld [vmem:[%s6 + $0x228] sm:$0xff]
  %v2544 = vld [vmem:[%s6 + $0x230] sm:$0xff]
  %v2545 = vld [vmem:[%s6 + $0x238] sm:$0xff]
  %v2546 = vld [vmem:[%s6 + $0x240] sm:$0xff]
  %v2547 = vld [vmem:[%s6 + $0x248] sm:$0xff]
  %v2548 = vld [vmem:[%s6 + $0x250] sm:$0xff]
  %v2549 = vld [vmem:[%s6 + $0x258] sm:$0xff]
  %v2550 = vld [vmem:[%s6 + $0x260] sm:$0xff]
  %v2551 = vld [vmem:[%s6 + $0x268] sm:$0xff]
  %v2552 = vld [vmem:[%s6 + $0x270] sm:$0xff]
  %v2553 = vld [vmem:[%s6 + $0x278] sm:$0xff]
  %v2554 = vld [vmem:[%s6 + $0x280] sm:$0xff]
  %v2555 = vld [vmem:[%s6 + $0x288] sm:$0xff]
  %v2556 = vld [vmem:[%s6 + $0x290] sm:$0xff]
  %v2557 = vld [vmem:[%s6 + $0x298] sm:$0xff]
  %v2558 = vld [vmem:[%s6 + $0x2a0] sm:$0xff]
  %v2559 = vld [vmem:[%s6 + $0x2a8] sm:$0xff]
  %v2560 = vld [vmem:[%s6 + $0x2b0] sm:$0xff]
  %v2561 = vld [vmem:[%s6 + $0x2b8] sm:$0xff]
  %v2562 = vld [vmem:[%s6 + $0x2c0] sm:$0xff]
  %v2563 = vld [vmem:[%s6 + $0x2c8] sm:$0xff]
  %v2564 = vld [vmem:[%s6 + $0x2d0] sm:$0xff]
  %v2565 = vld [vmem:[%s6 + $0x2d8] sm:$0xff]
  %v2566 = vld [vmem:[%s6 + $0x2e0] sm:$0xff]
  %v2567 = vld [vmem:[%s6 + $0x2e8] sm:$0xff]
  %v2568 = vld [vmem:[%s6 + $0x2f0] sm:$0xff]
  %v2569 = vld [vmem:[%s6 + $0x2f8] sm:$0xff]
  %v2570 = vld [vmem:[%s6 + $0x300] sm:$0xff]
  %v2571 = vld [vmem:[%s6 + $0x308] sm:$0xff]
  %v2572 = vld [vmem:[%s6 + $0x310] sm:$0xff]
  %v2573 = vld [vmem:[%s6 + $0x318] sm:$0xff]
  %v2574 = vld [vmem:[%s6 + $0x320] sm:$0xff]
  %v2575 = vld [vmem:[%s6 + $0x328] sm:$0xff]
  %v2576 = vld [vmem:[%s6 + $0x330] sm:$0xff]
  %v2577 = vld [vmem:[%s6 + $0x338] sm:$0xff]
  %v2578 = vld [vmem:[%s6 + $0x340] sm:$0xff]
  %v2579 = vld [vmem:[%s6 + $0x348] sm:$0xff]
  %v2580 = vld [vmem:[%s6 + $0x350] sm:$0xff]
  %v2581 = vld [vmem:[%s6 + $0x358] sm:$0xff]
  %v2582 = vld [vmem:[%s6 + $0x360] sm:$0xff]
  %v2583 = vld [vmem:[%s6 + $0x368] sm:$0xff]
  %v2584 = vld [vmem:[%s6 + $0x370] sm:$0xff]
  %v2585 = vld [vmem:[%s6 + $0x378] sm:$0xff]
  %v2586 = vld [vmem:[%s6 + $0x380] sm:$0xff]
  %v2587 = vld [vmem:[%s6 + $0x388] sm:$0xff]
  %v2588 = vld [vmem:[%s6 + $0x390] sm:$0xff]
  %v2589 = vld [vmem:[%s6 + $0x398] sm:$0xff]
  %v2590 = vld [vmem:[%s6 + $0x3a0] sm:$0xff]
  %v2591 = vld [vmem:[%s6 + $0x3a8] sm:$0xff]
  %v2592 = vld [vmem:[%s6 + $0x3b0] sm:$0xff]
  %v2593 = vld [vmem:[%s6 + $0x3b8] sm:$0xff]
  %v2594 = vld [vmem:[%s6 + $0x3c0] sm:$0xff]
  %v2595 = vld [vmem:[%s6 + $0x3c8] sm:$0xff]
  %v2596 = vld [vmem:[%s6 + $0x3d0] sm:$0xff]
  %v2597 = vld [vmem:[%s6 + $0x3d8] sm:$0xff]
  %v2598 = vld [vmem:[%s6 + $0x3e0] sm:$0xff]
  %v2599 = vld [vmem:[%s6 + $0x3e8] sm:$0xff]
  %v2600 = vld [vmem:[%s6 + $0x3f0] sm:$0xff]
  %v2601 = vld [vmem:[%s6 + $0x3f8] sm:$0xff]
  %v2602 = vld [vmem:[%s7] sm:$0x1]
  %v2604 = vperm.slane %v2602, 0
  %2606 = vmatpush.msra.mxu0 %v2489
  %2607 = vmatpush.msra.mxu0 %v2488
  %2608 = vmatpush.msra.mxu0 %v2487
  %2609 = vmatpush.msra.mxu0 %v2486
  %2610 = vmatpush.msra.mxu0 %v2485
  %2611 = vmatpush.msra.mxu0 %v2484
  %2612 = vmatpush.msra.mxu0 %v2483
  %2613 = vmatpush.msra.mxu0 %v2482
  %2614 = vmatpush.msra.mxu0 %v2481
  %2615 = vmatpush.msra.mxu0 %v2480
  %2616 = vmatpush.msra.mxu0 %v2479
  %2617 = vmatpush.msra.mxu0 %v2478
  %2618 = vmatpush.msra.mxu0 %v2477
  %2619 = vmatpush.msra.mxu0 %v2476
  %2620 = vmatpush.msra.mxu0 %v2475
  %2621 = vmatpush.msra.mxu0 %v2474
  %2622 = vmatmul.f32.gmra.mxu0 %v2466
  %v2623 = vpop.f32.mrf.mxu0
  %v2624 = vadd.f32 %v2604, %v2623
  %2625 = vdwg.mxu0
  %2626 = vmatpush.msra.mxu0 %v2505
  %2627 = vmatpush.msra.mxu0 %v2504
  %2628 = vmatpush.msra.mxu0 %v2503
  %2629 = vmatpush.msra.mxu0 %v2502
  %2630 = vmatpush.msra.mxu0 %v2501
  %2631 = vmatpush.msra.mxu0 %v2500
  %2632 = vmatpush.msra.mxu0 %v2499
  %2633 = vmatpush.msra.mxu0 %v2498
  %2634 = vmatpush.msra.mxu0 %v2497
  %2635 = vmatpush.msra.mxu0 %v2496
  %2636 = vmatpush.msra.mxu0 %v2495
  %2637 = vmatpush.msra.mxu0 %v2494
  %2638 = vmatpush.msra.mxu0 %v2493
  %2639 = vmatpush.msra.mxu0 %v2492
  %2640 = vmatpush.msra.mxu0 %v2491
  %2641 = vmatpush.msra.mxu0 %v2490
  %2642 = vmatmul.f32.gmra.mxu0 %v2467
  %v2643 = vpop.f32.mrf.mxu0
  %v2644 = vadd.f32 %v2624, %v2643
  %2645 = vdwg.mxu0
  %2646 = vmatpush.msra.mxu0 %v2521
  %2647 = vmatpush.msra.mxu0 %v2520
  %2648 = vmatpush.msra.mxu0 %v2519
  %2649 = vmatpush.msra.mxu0 %v2518
  %2650 = vmatpush.msra.mxu0 %v2517
  %2651 = vmatpush.msra.mxu0 %v2516
  %2652 = vmatpush.msra.mxu0 %v2515
  %2653 = vmatpush.msra.mxu0 %v2514
  %2654 = vmatpush.msra.mxu0 %v2513
  %2655 = vmatpush.msra.mxu0 %v2512
  %2656 = vmatpush.msra.mxu0 %v2511
  %2657 = vmatpush.msra.mxu0 %v2510
  %2658 = vmatpush.msra.mxu0 %v2509
  %2659 = vmatpush.msra.mxu0 %v2508
  %2660 = vmatpush.msra.mxu0 %v2507
  %2661 = vmatpush.msra.mxu0 %v2506
  %2662 = vmatmul.f32.gmra.mxu0 %v2468
  %v2663 = vpop.f32.mrf.mxu0
  %v2664 = vadd.f32 %v2644, %v2663
  %2665 = vdwg.mxu0
  %2666 = vmatpush.msra.mxu0 %v2537
  %2667 = vmatpush.msra.mxu0 %v2536
  %2668 = vmatpush.msra.mxu0 %v2535
  %2669 = vmatpush.msra.mxu0 %v2534
  %2670 = vmatpush.msra.mxu0 %v2533
  %2671 = vmatpush.msra.mxu0 %v2532
  %2672 = vmatpush.msra.mxu0 %v2531
  %2673 = vmatpush.msra.mxu0 %v2530
  %2674 = vmatpush.msra.mxu0 %v2529
  %2675 = vmatpush.msra.mxu0 %v2528
  %2676 = vmatpush.msra.mxu0 %v2527
  %2677 = vmatpush.msra.mxu0 %v2526
  %2678 = vmatpush.msra.mxu0 %v2525
  %2679 = vmatpush.msra.mxu0 %v2524
  %2680 = vmatpush.msra.mxu0 %v2523
  %2681 = vmatpush.msra.mxu0 %v2522
  %2682 = vmatmul.f32.gmra.mxu0 %v2469
  %v2683 = vpop.f32.mrf.mxu0
  %v2684 = vadd.f32 %v2664, %v2683
  %2685 = vdwg.mxu0
  %2686 = vmatpush.msra.mxu0 %v2553
  %2687 = vmatpush.msra.mxu0 %v2552
  %2688 = vmatpush.msra.mxu0 %v2551
  %2689 = vmatpush.msra.mxu0 %v2550
  %2690 = vmatpush.msra.mxu0 %v2549
  %2691 = vmatpush.msra.mxu0 %v2548
  %2692 = vmatpush.msra.mxu0 %v2547
  %2693 = vmatpush.msra.mxu0 %v2546
  %2694 = vmatpush.msra.mxu0 %v2545
  %2695 = vmatpush.msra.mxu0 %v2544
  %2696 = vmatpush.msra.mxu0 %v2543
  %2697 = vmatpush.msra.mxu0 %v2542
  %2698 = vmatpush.msra.mxu0 %v2541
  %2699 = vmatpush.msra.mxu0 %v2540
  %2700 = vmatpush.msra.mxu0 %v2539
  %2701 = vmatpush.msra.mxu0 %v2538
  %2702 = vmatmul.f32.gmra.mxu0 %v2470
  %v2703 = vpop.f32.mrf.mxu0
  %v2704 = vadd.f32 %v2684, %v2703
  %2705 = vdwg.mxu0
  %2706 = vmatpush.msra.mxu0 %v2569
  %2707 = vmatpush.msra.mxu0 %v2568
  %2708 = vmatpush.msra.mxu0 %v2567
  %2709 = vmatpush.msra.mxu0 %v2566
  %2710 = vmatpush.msra.mxu0 %v2565
  %2711 = vmatpush.msra.mxu0 %v2564
  %2712 = vmatpush.msra.mxu0 %v2563
  %2713 = vmatpush.msra.mxu0 %v2562
  %2714 = vmatpush.msra.mxu0 %v2561
  %2715 = vmatpush.msra.mxu0 %v2560
  %2716 = vmatpush.msra.mxu0 %v2559
  %2717 = vmatpush.msra.mxu0 %v2558
  %2718 = vmatpush.msra.mxu0 %v2557
  %2719 = vmatpush.msra.mxu0 %v2556
  %2720 = vmatpush.msra.mxu0 %v2555
  %2721 = vmatpush.msra.mxu0 %v2554
  %2722 = vmatmul.f32.gmra.mxu0 %v2471
  %v2723 = vpop.f32.mrf.mxu0
  %v2724 = vadd.f32 %v2704, %v2723
  %2725 = vdwg.mxu0
  %2726 = vmatpush.msra.mxu0 %v2585
  %2727 = vmatpush.msra.mxu0 %v2584
  %2728 = vmatpush.msra.mxu0 %v2583
  %2729 = vmatpush.msra.mxu0 %v2582
  %2730 = vmatpush.msra.mxu0 %v2581
  %2731 = vmatpush.msra.mxu0 %v2580
  %2732 = vmatpush.msra.mxu0 %v2579
  %2733 = vmatpush.msra.mxu0 %v2578
  %2734 = vmatpush.msra.mxu0 %v2577
  %2735 = vmatpush.msra.mxu0 %v2576
  %2736 = vmatpush.msra.mxu0 %v2575
  %2737 = vmatpush.msra.mxu0 %v2574
  %2738 = vmatpush.msra.mxu0 %v2573
  %2739 = vmatpush.msra.mxu0 %v2572
  %2740 = vmatpush.msra.mxu0 %v2571
  %2741 = vmatpush.msra.mxu0 %v2570
  %2742 = vmatmul.f32.gmra.mxu0 %v2472
  %v2743 = vpop.f32.mrf.mxu0
  %v2744 = vadd.f32 %v2724, %v2743
  %2745 = vdwg.mxu0
  %2746 = vmatpush.msra.mxu0 %v2601
  %2747 = vmatpush.msra.mxu0 %v2600
  %2748 = vmatpush.msra.mxu0 %v2599
  %2749 = vmatpush.msra.mxu0 %v2598
  %2750 = vmatpush.msra.mxu0 %v2597
  %2751 = vmatpush.msra.mxu0 %v2596
  %2752 = vmatpush.msra.mxu0 %v2595
  %2753 = vmatpush.msra.mxu0 %v2594
  %2754 = vmatpush.msra.mxu0 %v2593
  %2755 = vmatpush.msra.mxu0 %v2592
  %2756 = vmatpush.msra.mxu0 %v2591
  %2757 = vmatpush.msra.mxu0 %v2590
  %2758 = vmatpush.msra.mxu0 %v2589
  %2759 = vmatpush.msra.mxu0 %v2588
  %2760 = vmatpush.msra.mxu0 %v2587
  %2761 = vmatpush.msra.mxu0 %v2586
  %2762 = vmatmul.f32.gmra.mxu0 %v2473
  %v2763 = vpop.f32.mrf.mxu0
  %v2764 = vadd.f32 %v2744, %v2763
  %2765 = vdwg.mxu0
  %vm2766 = vcmask 58368
  %2767 = vst.msk [vmem:[%s8] sm:$0x3] %vm2766, %v2764
  // Predicated region
  $region34: #{multitask_convnet_forward.1} parent=0 // pred_check
    _
  $region35: #{multitask_convnet_forward.1} parent=0 // pred_check_branch
    %2769 = sbr.rel (0) target = $region37
  $region36: #{multitask_convnet_forward.1} parent=0 // pred_region
    _
  $region37: #{multitask_convnet_forward.1} parent=0 // pred_fallthru
    _
  // Predicated region
  $region38: #{multitask_convnet_forward.1} parent=0 // pred_check
    _
  $region39: #{multitask_convnet_forward.1} parent=0 // pred_check_branch
    %2771 = sbr.rel (0) target = $region41
  $region40: #{multitask_convnet_forward.1} parent=0 // pred_region
    _
  $region41: #{multitask_convnet_forward.1} parent=0 // pred_fallthru
    _

</llo_original>
